<compile_context>
chip_gen: v7x
topology: tpu7x:2x2x1
jax: 0.10.0
libtpu: 0.0.40
codegen_flags: <defaults>
</compile_context>

<pallas_src>
import functools

import jax
import jax.numpy as jnp
from jax.experimental import pallas as pl
from jax.experimental.pallas import tpu as pltpu


# ----------------------------------------------------------------------------
# One-time static resolution of pltpu.roll's rotation direction.
# ----------------------------------------------------------------------------
@functools.lru_cache(maxsize=None)
def _roll_is_jnp_roll() -> bool:
    """True iff pltpu.roll(x, s)[i] == x[(i - s) % n]  (jnp.roll convention)."""
    def probe(o_ref):
        o_ref[...] = pltpu.roll(
            jax.lax.broadcasted_iota(jnp.int32, (8, 128), 1), 1, axis=1)

    try:
        with jax.ensure_compile_time_eval():
            r = pl.pallas_call(
                probe, out_shape=jax.ShapeDtypeStruct((8, 128), jnp.int32))()
            return bool(r[0, 1] == 0)        # 0 -> jnp.roll-like, 2 -> opposite
    except Exception:
        return True                          # fall back to jnp.roll convention


def _tap_offsets(width):
    # Tap order matches the conv-kernel spatial order: t = kh*3 + kw,
    # (dy, dx) = (kh-1, kw-1); flat lane offset s = dy*W + dx (gather at p+s).
    return tuple(dy * width + dx for dy in (-1, 0, 1) for dx in (-1, 0, 1))


def _roll_amounts(width, lanes):
    """Static lane-rotation amount per tap so that result[p] = x[p + s]."""
    jnp_like = _roll_is_jnp_roll()
    return tuple(((-s) % lanes) if jnp_like else (s % lanes)
                 for s in _tap_offsets(width))


def _tap_masks(height, width):
    """(9, H*W) 0/1 f32 validity masks per tap (SAME zero padding)."""
    p = jnp.arange(height * width)
    y, x = p // width, p % width
    rows = [((y + dy >= 0) & (y + dy < height) &
             (x + dx >= 0) & (x + dx < width))
            for dy in (-1, 0, 1) for dx in (-1, 0, 1)]
    return jnp.stack(rows).astype(jnp.float32)


# ----------------------------------------------------------------------------
# Fused kernel: the entire forward pass for the whole batch.
# ----------------------------------------------------------------------------
def _kian_kernel(img_ref, mask_ref, tab_ref, cw_ref, cb_ref, gw_ref, gb_ref,
                 w1i_ref, w1g_ref, b1_ref, w2t_ref, b2_ref,
                 out_ref, stack_ref, iono_ref, *, batch, hw, roll_amounts):
    # img_ref  : (C_in, B*HW)      lane-dense image, lanes ordered (batch, pixel)
    # mask_ref : (9, B*HW)         precomputed 0/1 boundary masks per tap
    # cw_ref   : (C_out, 9*C_in)   conv weights, column = tap*C_in + ci
    # w1i_ref  : (C_out*HW, FU)    fu1 rows for the iono features (bf16)
    # stack_ref: (9*C_in, B*HW)    VMEM scratch: fused-tap matmul operand
    # iono_ref : (B, C_out*HW)     VMEM scratch: iono features, PyTorch order
    c_in = img_ref.shape[0]
    c_out = cw_ref.shape[0]

    x = img_ref[...]                                    # (C_in, B*HW) f32
    m = mask_ref[...]                                   # (9, B*HW)    f32

    # --- 3x3 SAME conv, all batch elements at once ---------------------------
    # Rolls are cyclic over the whole lane axis; every wrapped / cross-element
    # lane is zeroed by the precomputed mask, so no padded array is needed.
    for t, amt in enumerate(roll_amounts):
        shifted = x if amt == 0 else pltpu.roll(x, amt, axis=1)
        stack_ref[pl.ds(t * c_in, c_in), :] = shifted * m[t:t + 1, :]

    conv = jnp.dot(cw_ref[...], stack_ref[...],
                   preferred_element_type=jnp.float32)  # (C_out, B*HW)
    conv = jnp.maximum(conv + cb_ref[...], 0.0)

    # --- layout change: (C_out, B*HW) -> (B, C_out*HW)  (PyTorch .view) ------
    # Done with plain static-offset vreg copies (8 KB per element) instead of
    # an in-kernel transpose/reshape relayout.
    for b in range(batch):
        for c in range(c_out):
            iono_ref[pl.ds(b, 1), pl.ds(c * hw, hw)] = (
                conv[c:c + 1, b * hw:(b + 1) * hw])

    # --- geo branch -----------------------------------------------------------
    geo = jnp.maximum(
        jnp.dot(tab_ref[...], gw_ref[...],
                preferred_element_type=jnp.float32) + gb_ref[...], 0.0)

    # --- fu_dmlp: torch.cat folded into a split sum; batched M = B -----------
    iono = iono_ref[...].astype(w1i_ref.dtype)          # bf16 LHS, f32 accum
    h = (jnp.dot(iono, w1i_ref[...], preferred_element_type=jnp.float32)
         + jnp.dot(geo, w1g_ref[...], preferred_element_type=jnp.float32)
         + b1_ref[...])
    h = jnp.maximum(h, 0.0)                             # (B, FU)

    # final Linear(FU -> 1) as a lane reduction (avoids an N=1 matmul)
    out_ref[...] = (jnp.sum(h * w2t_ref[...], axis=1, keepdims=True)
                    + b2_ref[...])                      # (B, 1)


# ----------------------------------------------------------------------------
# Wrapper
# ----------------------------------------------------------------------------
def kian_net_forward(kp, image, tabular):
    """kp: kernel-layout params from prepare_kernel_params; image is NCHW."""
    B, C_in, H, W = image.shape
    HW = H * W
    C_out = kp["cb"].shape[0]
    FLAT, FU = kp["w1i"].shape
    OUT = kp["b2"].shape[1]
    assert FLAT == C_out * HW and OUT == 1

    # Lane-dense image layout: rows = input channels, lanes = (batch, pixel).
    img2 = jnp.transpose(image.reshape(B, C_in, HW),
                         (1, 0, 2)).reshape(C_in, B * HW)
    mask = jnp.tile(_tap_masks(H, W), (1, B))           # (9, B*HW)

    kernel = functools.partial(
        _kian_kernel, batch=B, hw=HW, roll_amounts=_roll_amounts(W, B * HW))

    return pl.pallas_call(
        kernel,
        out_shape=jax.ShapeDtypeStruct((B, OUT), jnp.float32),
        scratch_shapes=[
            pltpu.VMEM((9 * C_in, B * HW), jnp.float32),   # fused-tap operand
            pltpu.VMEM((B, FLAT), jnp.float32),            # iono features
        ],
    )(img2, mask, tabular, kp["cw"], kp["cb"], kp["gw"], kp["gb"],
      kp["w1i"], kp["w1g"], kp["b1"], kp["w2t"], kp["b2"])


def prepare_kernel_params(params, flat_dim, w1i_dtype=jnp.bfloat16):
    """One-time repack of natural (PyTorch-style) weights into kernel layouts."""
    c_out, c_in = params["conv_w"].shape[:2]
    return {
        # conv: (C_out, C_in, 3, 3) -> (C_out, 9*C_in), column = (kh*3+kw)*C_in+ci
        "cw": jnp.transpose(params["conv_w"], (0, 2, 3, 1)).reshape(c_out,
                                                                    9 * c_in),
        "cb": params["conv_b"].reshape(c_out, 1),
        "gw": params["geo_w"],                       # (in, out) == torch weight.T
        "gb": params["geo_b"].reshape(1, -1),
        # fu1 split: iono rows (PyTorch (C,H,W) flatten order) + geo rows
        "w1i": params["fu1_w"][:flat_dim].astype(w1i_dtype),
        "w1g": params["fu1_w"][flat_dim:],
        "b1": params["fu1_b"].reshape(1, -1),
        "w2t": params["fu2_w"].T,                    # (1, fu_hidden)
        "b2": params["fu2_b"].reshape(1, -1),
    }


def init_params(key, c_in, c_out, tab_dim, geo_hidden, flat_dim, fu_hidden,
                out_dim):
    ks = jax.random.split(key, 8)
    s = 0.05
    return {
        "conv_w": s * jax.random.normal(ks[0], (c_out, c_in, 3, 3), jnp.float32),
        "conv_b": s * jax.random.normal(ks[1], (c_out,), jnp.float32),
        "geo_w": s * jax.random.normal(ks[2], (tab_dim, geo_hidden), jnp.float32),
        "geo_b": s * jax.random.normal(ks[3], (geo_hidden,), jnp.float32),
        "fu1_w": s * jax.random.normal(ks[4], (flat_dim + geo_hidden, fu_hidden),
                                       jnp.float32),
        "fu1_b": s * jax.random.normal(ks[5], (fu_hidden,), jnp.float32),
        "fu2_w": s * jax.random.normal(ks[6], (fu_hidden, out_dim), jnp.float32),
        "fu2_b": s * jax.random.normal(ks[7], (out_dim,), jnp.float32),
    }


def kian_net_reference(params, image, tabular):
    """Pure-JAX reference (PyTorch semantics) for the correctness check."""
    hp = jax.lax.Precision.HIGHEST
    conv = jax.lax.conv_general_dilated(
        image, params["conv_w"], window_strides=(1, 1), padding="SAME",
        dimension_numbers=("NCHW", "OIHW", "NCHW"), precision=hp)
    conv = jnp.maximum(conv + params["conv_b"][None, :, None, None], 0.0)
    iono = conv.reshape(image.shape[0], -1)
    geo = jnp.maximum(jnp.dot(tabular, params["geo_w"], precision=hp)
                      + params["geo_b"], 0.0)
    comb = jnp.concatenate([iono, geo], axis=1)
    h = jnp.maximum(jnp.dot(comb, params["fu1_w"], precision=hp)
                    + params["fu1_b"], 0.0)
    return jnp.dot(h, params["fu2_w"], precision=hp) + params["fu2_b"]


if __name__ == "__main__":
    B, C_in, H, W = 2, 4, 16, 16
    C_out = 8
    TAB_DIM, GEO_HIDDEN = 8, 32
    FU_HIDDEN, OUT_DIM = 64, 1
    FLAT_DIM = C_out * H * W

    key = jax.random.PRNGKey(0)
    k_img, k_tab, k_par = jax.random.split(key, 3)

    image = jax.random.normal(k_img, (B, C_in, H, W), jnp.float32)   # NCHW
    tabular = jax.random.normal(k_tab, (B, TAB_DIM), jnp.float32)

    params = init_params(k_par, C_in, C_out, TAB_DIM, GEO_HIDDEN,
                         FLAT_DIM, FU_HIDDEN, OUT_DIM)
    kparams = prepare_kernel_params(params, FLAT_DIM)   # one-time repack

    out = jax.jit(kian_net_forward)(kparams, image, tabular)
    out = jax.block_until_ready(out)
    assert out.shape == (B, OUT_DIM), out.shape

    ref = kian_net_reference(params, image, tabular)
    assert jnp.allclose(out, ref, atol=2e-2, rtol=2e-2), (out, ref)
    print("KERNEL_OK")
</pallas_src>

<mosaic_0001>
module attributes {stable_mosaic.version = 11 : i64} {
  func.func @_kian_kernel(%arg0: memref<4x512xf32, #tpu.memory_space<vmem>>, %arg1: memref<9x512xf32, #tpu.memory_space<vmem>>, %arg2: memref<2x8xf32, #tpu.memory_space<vmem>>, %arg3: memref<8x36xf32, #tpu.memory_space<vmem>>, %arg4: memref<8x1xf32, #tpu.memory_space<vmem>>, %arg5: memref<8x32xf32, #tpu.memory_space<vmem>>, %arg6: memref<1x32xf32, #tpu.memory_space<vmem>>, %arg7: memref<2048x64xbf16, #tpu.memory_space<vmem>>, %arg8: memref<32x64xf32, #tpu.memory_space<vmem>>, %arg9: memref<1x64xf32, #tpu.memory_space<vmem>>, %arg10: memref<1x64xf32, #tpu.memory_space<vmem>>, %arg11: memref<1x1xf32, #tpu.memory_space<vmem>>, %arg12: memref<2x1xf32, #tpu.memory_space<vmem>>, %arg13: memref<36x512xf32, #tpu.memory_space<vmem>>, %arg14: memref<2x2048xf32, #tpu.memory_space<vmem>>) attributes {dimension_semantics = [], scalar_prefetch = 0 : i64, scratch_operands = 2 : i64, tpu.core_type = #tpu.core_type<tc>} {
    %c0 = arith.constant 0 : index
    %c0_0 = arith.constant 0 : index
    %0 = vector.load %arg0[%c0, %c0_0] : memref<4x512xf32, #tpu.memory_space<vmem>>, vector<4x512xf32>
    %c0_1 = arith.constant 0 : index
    %c0_2 = arith.constant 0 : index
    %1 = vector.load %arg1[%c0_1, %c0_2] : memref<9x512xf32, #tpu.memory_space<vmem>>, vector<9x512xf32>
    %c17_i32 = arith.constant 17 : i32
    %2 = tpu.dynamic_rotate %0 by %c17_i32 dim 1 : vector<4x512xf32>, i32 -> vector<4x512xf32>
    %3 = vector.extract_strided_slice %1 {offsets = [0, 0], sizes = [1, 512], strides = [1, 1]} : vector<9x512xf32> to vector<1x512xf32>
    %4 = vector.broadcast %3 : vector<1x512xf32> to vector<4x512xf32>
    %5 = arith.mulf %2, %4 : vector<4x512xf32>
    %c0_3 = arith.constant 0 : index
    %c0_4 = arith.constant 0 : index
    %6 = vector.load %arg13[%c0_3, %c0_4] : memref<36x512xf32, #tpu.memory_space<vmem>>, vector<4x512xf32>
    tpu.vector_store %arg13[%c0_3, %c0_4], %5 {strides = array<i32>} : memref<36x512xf32, #tpu.memory_space<vmem>>, vector<4x512xf32>,
    %c16_i32 = arith.constant 16 : i32
    %7 = tpu.dynamic_rotate %0 by %c16_i32 dim 1 : vector<4x512xf32>, i32 -> vector<4x512xf32>
    %8 = vector.extract_strided_slice %1 {offsets = [1, 0], sizes = [1, 512], strides = [1, 1]} : vector<9x512xf32> to vector<1x512xf32>
    %9 = vector.broadcast %8 : vector<1x512xf32> to vector<4x512xf32>
    %10 = arith.mulf %7, %9 : vector<4x512xf32>
    %c4 = arith.constant 4 : index
    %c0_5 = arith.constant 0 : index
    %11 = vector.load %arg13[%c4, %c0_5] : memref<36x512xf32, #tpu.memory_space<vmem>>, vector<4x512xf32>
    tpu.vector_store %arg13[%c4, %c0_5], %10 {strides = array<i32>} : memref<36x512xf32, #tpu.memory_space<vmem>>, vector<4x512xf32>,
    %c15_i32 = arith.constant 15 : i32
    %12 = tpu.dynamic_rotate %0 by %c15_i32 dim 1 : vector<4x512xf32>, i32 -> vector<4x512xf32>
    %13 = vector.extract_strided_slice %1 {offsets = [2, 0], sizes = [1, 512], strides = [1, 1]} : vector<9x512xf32> to vector<1x512xf32>
    %14 = vector.broadcast %13 : vector<1x512xf32> to vector<4x512xf32>
    %15 = arith.mulf %12, %14 : vector<4x512xf32>
    %c8 = arith.constant 8 : index
    %c0_6 = arith.constant 0 : index
    %16 = vector.load %arg13[%c8, %c0_6] : memref<36x512xf32, #tpu.memory_space<vmem>>, vector<4x512xf32>
    tpu.vector_store %arg13[%c8, %c0_6], %15 {strides = array<i32>} : memref<36x512xf32, #tpu.memory_space<vmem>>, vector<4x512xf32>,
    %c1_i32 = arith.constant 1 : i32
    %17 = tpu.dynamic_rotate %0 by %c1_i32 dim 1 : vector<4x512xf32>, i32 -> vector<4x512xf32>
    %18 = vector.extract_strided_slice %1 {offsets = [3, 0], sizes = [1, 512], strides = [1, 1]} : vector<9x512xf32> to vector<1x512xf32>
    %19 = vector.broadcast %18 : vector<1x512xf32> to vector<4x512xf32>
    %20 = arith.mulf %17, %19 : vector<4x512xf32>
    %c12 = arith.constant 12 : index
    %c0_7 = arith.constant 0 : index
    %21 = vector.load %arg13[%c12, %c0_7] : memref<36x512xf32, #tpu.memory_space<vmem>>, vector<4x512xf32>
    tpu.vector_store %arg13[%c12, %c0_7], %20 {strides = array<i32>} : memref<36x512xf32, #tpu.memory_space<vmem>>, vector<4x512xf32>,
    %22 = vector.extract_strided_slice %1 {offsets = [4, 0], sizes = [1, 512], strides = [1, 1]} : vector<9x512xf32> to vector<1x512xf32>
    %23 = vector.broadcast %22 : vector<1x512xf32> to vector<4x512xf32>
    %24 = arith.mulf %0, %23 : vector<4x512xf32>
    %c16 = arith.constant 16 : index
    %c0_8 = arith.constant 0 : index
    %25 = vector.load %arg13[%c16, %c0_8] : memref<36x512xf32, #tpu.memory_space<vmem>>, vector<4x512xf32>
    tpu.vector_store %arg13[%c16, %c0_8], %24 {strides = array<i32>} : memref<36x512xf32, #tpu.memory_space<vmem>>, vector<4x512xf32>,
    %c511_i32 = arith.constant 511 : i32
    %26 = tpu.dynamic_rotate %0 by %c511_i32 dim 1 : vector<4x512xf32>, i32 -> vector<4x512xf32>
    %27 = vector.extract_strided_slice %1 {offsets = [5, 0], sizes = [1, 512], strides = [1, 1]} : vector<9x512xf32> to vector<1x512xf32>
    %28 = vector.broadcast %27 : vector<1x512xf32> to vector<4x512xf32>
    %29 = arith.mulf %26, %28 : vector<4x512xf32>
    %c20 = arith.constant 20 : index
    %c0_9 = arith.constant 0 : index
    %30 = vector.load %arg13[%c20, %c0_9] : memref<36x512xf32, #tpu.memory_space<vmem>>, vector<4x512xf32>
    tpu.vector_store %arg13[%c20, %c0_9], %29 {strides = array<i32>} : memref<36x512xf32, #tpu.memory_space<vmem>>, vector<4x512xf32>,
    %c497_i32 = arith.constant 497 : i32
    %31 = tpu.dynamic_rotate %0 by %c497_i32 dim 1 : vector<4x512xf32>, i32 -> vector<4x512xf32>
    %32 = vector.extract_strided_slice %1 {offsets = [6, 0], sizes = [1, 512], strides = [1, 1]} : vector<9x512xf32> to vector<1x512xf32>
    %33 = vector.broadcast %32 : vector<1x512xf32> to vector<4x512xf32>
    %34 = arith.mulf %31, %33 : vector<4x512xf32>
    %c24 = arith.constant 24 : index
    %c0_10 = arith.constant 0 : index
    %35 = vector.load %arg13[%c24, %c0_10] : memref<36x512xf32, #tpu.memory_space<vmem>>, vector<4x512xf32>
    tpu.vector_store %arg13[%c24, %c0_10], %34 {strides = array<i32>} : memref<36x512xf32, #tpu.memory_space<vmem>>, vector<4x512xf32>,
    %c496_i32 = arith.constant 496 : i32
    %36 = tpu.dynamic_rotate %0 by %c496_i32 dim 1 : vector<4x512xf32>, i32 -> vector<4x512xf32>
    %37 = vector.extract_strided_slice %1 {offsets = [7, 0], sizes = [1, 512], strides = [1, 1]} : vector<9x512xf32> to vector<1x512xf32>
    %38 = vector.broadcast %37 : vector<1x512xf32> to vector<4x512xf32>
    %39 = arith.mulf %36, %38 : vector<4x512xf32>
    %c28 = arith.constant 28 : index
    %c0_11 = arith.constant 0 : index
    %40 = vector.load %arg13[%c28, %c0_11] : memref<36x512xf32, #tpu.memory_space<vmem>>, vector<4x512xf32>
    tpu.vector_store %arg13[%c28, %c0_11], %39 {strides = array<i32>} : memref<36x512xf32, #tpu.memory_space<vmem>>, vector<4x512xf32>,
    %c495_i32 = arith.constant 495 : i32
    %41 = tpu.dynamic_rotate %0 by %c495_i32 dim 1 : vector<4x512xf32>, i32 -> vector<4x512xf32>
    %42 = vector.extract_strided_slice %1 {offsets = [8, 0], sizes = [1, 512], strides = [1, 1]} : vector<9x512xf32> to vector<1x512xf32>
    %43 = vector.broadcast %42 : vector<1x512xf32> to vector<4x512xf32>
    %44 = arith.mulf %41, %43 : vector<4x512xf32>
    %c32 = arith.constant 32 : index
    %c0_12 = arith.constant 0 : index
    %45 = vector.load %arg13[%c32, %c0_12] : memref<36x512xf32, #tpu.memory_space<vmem>>, vector<4x512xf32>
    tpu.vector_store %arg13[%c32, %c0_12], %44 {strides = array<i32>} : memref<36x512xf32, #tpu.memory_space<vmem>>, vector<4x512xf32>,
    %c0_13 = arith.constant 0 : index
    %c0_14 = arith.constant 0 : index
    %46 = vector.load %arg3[%c0_13, %c0_14] : memref<8x36xf32, #tpu.memory_space<vmem>>, vector<8x36xf32>
    %c0_15 = arith.constant 0 : index
    %c0_16 = arith.constant 0 : index
    %47 = vector.load %arg13[%c0_15, %c0_16] : memref<36x512xf32, #tpu.memory_space<vmem>>, vector<36x512xf32>
    %cst = arith.constant dense<0.000000e+00> : vector<8x512xf32>
    %48 = tpu.matmul %46, %47, %cst {dimension_numbers = #tpu.dot_dimension_numbers<[1], [0], [0], [1], [0, 0, 1, 1], [], []>} : vector<8x36xf32>, vector<36x512xf32>, vector<8x512xf32> -> vector<8x512xf32>
    %c0_17 = arith.constant 0 : index
    %c0_18 = arith.constant 0 : index
    %49 = vector.load %arg4[%c0_17, %c0_18] : memref<8x1xf32, #tpu.memory_space<vmem>>, vector<8x1xf32>
    %50 = vector.broadcast %49 : vector<8x1xf32> to vector<8x512xf32>
    %51 = arith.addf %48, %50 : vector<8x512xf32>
    %cst_19 = arith.constant 0.000000e+00 : f32
    %52 = vector.broadcast %cst_19 : f32 to vector<8x512xf32>
    %53 = arith.maximumf %51, %52 : vector<8x512xf32>
    %54 = vector.extract_strided_slice %53 {offsets = [0, 0], sizes = [1, 256], strides = [1, 1]} : vector<8x512xf32> to vector<1x256xf32>
    %c0_20 = arith.constant 0 : index
    %c0_21 = arith.constant 0 : index
    %55 = vector.load %arg14[%c0_20, %c0_21] : memref<2x2048xf32, #tpu.memory_space<vmem>>, vector<1x256xf32>
    tpu.vector_store %arg14[%c0_20, %c0_21], %54 {strides = array<i32>} : memref<2x2048xf32, #tpu.memory_space<vmem>>, vector<1x256xf32>,
    %56 = vector.extract_strided_slice %53 {offsets = [1, 0], sizes = [1, 256], strides = [1, 1]} : vector<8x512xf32> to vector<1x256xf32>
    %c0_22 = arith.constant 0 : index
    %c256 = arith.constant 256 : index
    %57 = vector.load %arg14[%c0_22, %c256] : memref<2x2048xf32, #tpu.memory_space<vmem>>, vector<1x256xf32>
    tpu.vector_store %arg14[%c0_22, %c256], %56 {strides = array<i32>} : memref<2x2048xf32, #tpu.memory_space<vmem>>, vector<1x256xf32>,
    %58 = vector.extract_strided_slice %53 {offsets = [2, 0], sizes = [1, 256], strides = [1, 1]} : vector<8x512xf32> to vector<1x256xf32>
    %c0_23 = arith.constant 0 : index
    %c512 = arith.constant 512 : index
    %59 = vector.load %arg14[%c0_23, %c512] : memref<2x2048xf32, #tpu.memory_space<vmem>>, vector<1x256xf32>
    tpu.vector_store %arg14[%c0_23, %c512], %58 {strides = array<i32>} : memref<2x2048xf32, #tpu.memory_space<vmem>>, vector<1x256xf32>,
    %60 = vector.extract_strided_slice %53 {offsets = [3, 0], sizes = [1, 256], strides = [1, 1]} : vector<8x512xf32> to vector<1x256xf32>
    %c0_24 = arith.constant 0 : index
    %c768 = arith.constant 768 : index
    %61 = vector.load %arg14[%c0_24, %c768] : memref<2x2048xf32, #tpu.memory_space<vmem>>, vector<1x256xf32>
    tpu.vector_store %arg14[%c0_24, %c768], %60 {strides = array<i32>} : memref<2x2048xf32, #tpu.memory_space<vmem>>, vector<1x256xf32>,
    %62 = vector.extract_strided_slice %53 {offsets = [4, 0], sizes = [1, 256], strides = [1, 1]} : vector<8x512xf32> to vector<1x256xf32>
    %c0_25 = arith.constant 0 : index
    %c1024 = arith.constant 1024 : index
    %63 = vector.load %arg14[%c0_25, %c1024] : memref<2x2048xf32, #tpu.memory_space<vmem>>, vector<1x256xf32>
    tpu.vector_store %arg14[%c0_25, %c1024], %62 {strides = array<i32>} : memref<2x2048xf32, #tpu.memory_space<vmem>>, vector<1x256xf32>,
    %64 = vector.extract_strided_slice %53 {offsets = [5, 0], sizes = [1, 256], strides = [1, 1]} : vector<8x512xf32> to vector<1x256xf32>
    %c0_26 = arith.constant 0 : index
    %c1280 = arith.constant 1280 : index
    %65 = vector.load %arg14[%c0_26, %c1280] : memref<2x2048xf32, #tpu.memory_space<vmem>>, vector<1x256xf32>
    tpu.vector_store %arg14[%c0_26, %c1280], %64 {strides = array<i32>} : memref<2x2048xf32, #tpu.memory_space<vmem>>, vector<1x256xf32>,
    %66 = vector.extract_strided_slice %53 {offsets = [6, 0], sizes = [1, 256], strides = [1, 1]} : vector<8x512xf32> to vector<1x256xf32>
    %c0_27 = arith.constant 0 : index
    %c1536 = arith.constant 1536 : index
    %67 = vector.load %arg14[%c0_27, %c1536] : memref<2x2048xf32, #tpu.memory_space<vmem>>, vector<1x256xf32>
    tpu.vector_store %arg14[%c0_27, %c1536], %66 {strides = array<i32>} : memref<2x2048xf32, #tpu.memory_space<vmem>>, vector<1x256xf32>,
    %68 = vector.extract_strided_slice %53 {offsets = [7, 0], sizes = [1, 256], strides = [1, 1]} : vector<8x512xf32> to vector<1x256xf32>
    %c0_28 = arith.constant 0 : index
    %c1792 = arith.constant 1792 : index
    %69 = vector.load %arg14[%c0_28, %c1792] : memref<2x2048xf32, #tpu.memory_space<vmem>>, vector<1x256xf32>
    tpu.vector_store %arg14[%c0_28, %c1792], %68 {strides = array<i32>} : memref<2x2048xf32, #tpu.memory_space<vmem>>, vector<1x256xf32>,
    %70 = vector.extract_strided_slice %53 {offsets = [0, 256], sizes = [1, 256], strides = [1, 1]} : vector<8x512xf32> to vector<1x256xf32>
    %c1 = arith.constant 1 : index
    %c0_29 = arith.constant 0 : index
    %71 = vector.load %arg14[%c1, %c0_29] : memref<2x2048xf32, #tpu.memory_space<vmem>>, vector<1x256xf32>
    tpu.vector_store %arg14[%c1, %c0_29], %70 {strides = array<i32>} : memref<2x2048xf32, #tpu.memory_space<vmem>>, vector<1x256xf32>,
    %72 = vector.extract_strided_slice %53 {offsets = [1, 256], sizes = [1, 256], strides = [1, 1]} : vector<8x512xf32> to vector<1x256xf32>
    %c1_30 = arith.constant 1 : index
    %c256_31 = arith.constant 256 : index
    %73 = vector.load %arg14[%c1_30, %c256_31] : memref<2x2048xf32, #tpu.memory_space<vmem>>, vector<1x256xf32>
    tpu.vector_store %arg14[%c1_30, %c256_31], %72 {strides = array<i32>} : memref<2x2048xf32, #tpu.memory_space<vmem>>, vector<1x256xf32>,
    %74 = vector.extract_strided_slice %53 {offsets = [2, 256], sizes = [1, 256], strides = [1, 1]} : vector<8x512xf32> to vector<1x256xf32>
    %c1_32 = arith.constant 1 : index
    %c512_33 = arith.constant 512 : index
    %75 = vector.load %arg14[%c1_32, %c512_33] : memref<2x2048xf32, #tpu.memory_space<vmem>>, vector<1x256xf32>
    tpu.vector_store %arg14[%c1_32, %c512_33], %74 {strides = array<i32>} : memref<2x2048xf32, #tpu.memory_space<vmem>>, vector<1x256xf32>,
    %76 = vector.extract_strided_slice %53 {offsets = [3, 256], sizes = [1, 256], strides = [1, 1]} : vector<8x512xf32> to vector<1x256xf32>
    %c1_34 = arith.constant 1 : index
    %c768_35 = arith.constant 768 : index
    %77 = vector.load %arg14[%c1_34, %c768_35] : memref<2x2048xf32, #tpu.memory_space<vmem>>, vector<1x256xf32>
    tpu.vector_store %arg14[%c1_34, %c768_35], %76 {strides = array<i32>} : memref<2x2048xf32, #tpu.memory_space<vmem>>, vector<1x256xf32>,
    %78 = vector.extract_strided_slice %53 {offsets = [4, 256], sizes = [1, 256], strides = [1, 1]} : vector<8x512xf32> to vector<1x256xf32>
    %c1_36 = arith.constant 1 : index
    %c1024_37 = arith.constant 1024 : index
    %79 = vector.load %arg14[%c1_36, %c1024_37] : memref<2x2048xf32, #tpu.memory_space<vmem>>, vector<1x256xf32>
    tpu.vector_store %arg14[%c1_36, %c1024_37], %78 {strides = array<i32>} : memref<2x2048xf32, #tpu.memory_space<vmem>>, vector<1x256xf32>,
    %80 = vector.extract_strided_slice %53 {offsets = [5, 256], sizes = [1, 256], strides = [1, 1]} : vector<8x512xf32> to vector<1x256xf32>
    %c1_38 = arith.constant 1 : index
    %c1280_39 = arith.constant 1280 : index
    %81 = vector.load %arg14[%c1_38, %c1280_39] : memref<2x2048xf32, #tpu.memory_space<vmem>>, vector<1x256xf32>
    tpu.vector_store %arg14[%c1_38, %c1280_39], %80 {strides = array<i32>} : memref<2x2048xf32, #tpu.memory_space<vmem>>, vector<1x256xf32>,
    %82 = vector.extract_strided_slice %53 {offsets = [6, 256], sizes = [1, 256], strides = [1, 1]} : vector<8x512xf32> to vector<1x256xf32>
    %c1_40 = arith.constant 1 : index
    %c1536_41 = arith.constant 1536 : index
    %83 = vector.load %arg14[%c1_40, %c1536_41] : memref<2x2048xf32, #tpu.memory_space<vmem>>, vector<1x256xf32>
    tpu.vector_store %arg14[%c1_40, %c1536_41], %82 {strides = array<i32>} : memref<2x2048xf32, #tpu.memory_space<vmem>>, vector<1x256xf32>,
    %84 = vector.extract_strided_slice %53 {offsets = [7, 256], sizes = [1, 256], strides = [1, 1]} : vector<8x512xf32> to vector<1x256xf32>
    %c1_42 = arith.constant 1 : index
    %c1792_43 = arith.constant 1792 : index
    %85 = vector.load %arg14[%c1_42, %c1792_43] : memref<2x2048xf32, #tpu.memory_space<vmem>>, vector<1x256xf32>
    tpu.vector_store %arg14[%c1_42, %c1792_43], %84 {strides = array<i32>} : memref<2x2048xf32, #tpu.memory_space<vmem>>, vector<1x256xf32>,
    %c0_44 = arith.constant 0 : index
    %c0_45 = arith.constant 0 : index
    %86 = vector.load %arg2[%c0_44, %c0_45] : memref<2x8xf32, #tpu.memory_space<vmem>>, vector<2x8xf32>
    %c0_46 = arith.constant 0 : index
    %c0_47 = arith.constant 0 : index
    %87 = vector.load %arg5[%c0_46, %c0_47] : memref<8x32xf32, #tpu.memory_space<vmem>>, vector<8x32xf32>
    %cst_48 = arith.constant dense<0.000000e+00> : vector<2x32xf32>
    %88 = tpu.matmul %86, %87, %cst_48 {dimension_numbers = #tpu.dot_dimension_numbers<[1], [0], [0], [1], [0, 0, 1, 1], [], []>} : vector<2x8xf32>, vector<8x32xf32>, vector<2x32xf32> -> vector<2x32xf32>
    %c0_49 = arith.constant 0 : index
    %c0_50 = arith.constant 0 : index
    %89 = vector.load %arg6[%c0_49, %c0_50] : memref<1x32xf32, #tpu.memory_space<vmem>>, vector<1x32xf32>
    %90 = vector.broadcast %89 : vector<1x32xf32> to vector<2x32xf32>
    %91 = arith.addf %88, %90 : vector<2x32xf32>
    %cst_51 = arith.constant 0.000000e+00 : f32
    %92 = vector.broadcast %cst_51 : f32 to vector<2x32xf32>
    %93 = arith.maximumf %91, %92 : vector<2x32xf32>
    %c0_52 = arith.constant 0 : index
    %c0_53 = arith.constant 0 : index
    %94 = vector.load %arg14[%c0_52, %c0_53] : memref<2x2048xf32, #tpu.memory_space<vmem>>, vector<2x2048xf32>
    %95 = arith.truncf %94 : vector<2x2048xf32> to vector<2x2048xbf16>
    %c0_54 = arith.constant 0 : index
    %c0_55 = arith.constant 0 : index
    %96 = vector.load %arg7[%c0_54, %c0_55] : memref<2048x64xbf16, #tpu.memory_space<vmem>>, vector<2048x64xbf16>
    %cst_56 = arith.constant dense<0.000000e+00> : vector<2x64xf32>
    %97 = tpu.matmul %95, %96, %cst_56 {dimension_numbers = #tpu.dot_dimension_numbers<[1], [0], [0], [1], [0, 0, 1, 1], [], []>} : vector<2x2048xbf16>, vector<2048x64xbf16>, vector<2x64xf32> -> vector<2x64xf32>
    %c0_57 = arith.constant 0 : index
    %c0_58 = arith.constant 0 : index
    %98 = vector.load %arg8[%c0_57, %c0_58] : memref<32x64xf32, #tpu.memory_space<vmem>>, vector<32x64xf32>
    %cst_59 = arith.constant dense<0.000000e+00> : vector<2x64xf32>
    %99 = tpu.matmul %93, %98, %cst_59 {dimension_numbers = #tpu.dot_dimension_numbers<[1], [0], [0], [1], [0, 0, 1, 1], [], []>} : vector<2x32xf32>, vector<32x64xf32>, vector<2x64xf32> -> vector<2x64xf32>
    %100 = arith.addf %97, %99 : vector<2x64xf32>
    %c0_60 = arith.constant 0 : index
    %c0_61 = arith.constant 0 : index
    %101 = vector.load %arg9[%c0_60, %c0_61] : memref<1x64xf32, #tpu.memory_space<vmem>>, vector<1x64xf32>
    %102 = vector.broadcast %101 : vector<1x64xf32> to vector<2x64xf32>
    %103 = arith.addf %100, %102 : vector<2x64xf32>
    %cst_62 = arith.constant 0.000000e+00 : f32
    %104 = vector.broadcast %cst_62 : f32 to vector<2x64xf32>
    %105 = arith.maximumf %103, %104 : vector<2x64xf32>
    %c0_63 = arith.constant 0 : index
    %c0_64 = arith.constant 0 : index
    %106 = vector.load %arg10[%c0_63, %c0_64] : memref<1x64xf32, #tpu.memory_space<vmem>>, vector<1x64xf32>
    %107 = vector.broadcast %106 : vector<1x64xf32> to vector<2x64xf32>
    %108 = arith.mulf %105, %107 : vector<2x64xf32>
    %cst_65 = arith.constant dense<0.000000e+00> : vector<2xf32>
    %109 = vector.multi_reduction <add>, %108, %cst_65 [1] : vector<2x64xf32> to vector<2xf32>
    %110 = vector.shape_cast %109 : vector<2xf32> to vector<2x1xf32>
    %c0_66 = arith.constant 0 : index
    %c0_67 = arith.constant 0 : index
    %111 = vector.load %arg11[%c0_66, %c0_67] : memref<1x1xf32, #tpu.memory_space<vmem>>, vector<1x1xf32>
    %112 = vector.broadcast %111 : vector<1x1xf32> to vector<2x1xf32>
    %113 = arith.addf %110, %112 : vector<2x1xf32>
    %c0_68 = arith.constant 0 : index
    %c0_69 = arith.constant 0 : index
    %114 = vector.load %arg12[%c0_68, %c0_69] : memref<2x1xf32, #tpu.memory_space<vmem>>, vector<2x1xf32>
    tpu.vector_store %arg12[%c0_68, %c0_69], %113 {strides = array<i32>} : memref<2x1xf32, #tpu.memory_space<vmem>>, vector<2x1xf32>,
    return
  }
}

</mosaic_0001>

<llo_original>
// kernel: kian_net_forward.1
$region0: #{kian_net_forward.1}
  #allocation0 [shape = 'u32[]', space=smem, size = 0x4, offset = 0x4, fixed_abs, tag = 'smem constant byte address 0x4 - core index']
  #allocation1 [shape = 'u32[144,128]{1,0:T(1,128)}', space=vmem, size = 0x12000, scoped, tag = 'internal scratch']
  #allocation2 [shape = 'f32[36,512]{1,0:T(8,128)}', space=vmem, size = 0x14000, scoped, tag = 'scratch operand']
  #allocation3 [shape = 'f32[2,2048]{1,0:T(2,128)}', space=vmem, size = 0x4000, scoped, tag = 'scratch operand']
  #allocation4 [shape = 'f32[1,1]{1,0:T(1,128)S(1)}', space=vmem, size = 0x200, scoped, tag = 'scoped memory for kian_net_forward.1']
  %s0 = inlined_call_operand.vmem [shape: f32[4,512], index: 0, kind: input, shape index: {}]
  %s1 = inlined_call_operand.vmem [shape: f32[9,512], index: 1, kind: input, shape index: {}]
  %s2 = inlined_call_operand.vmem [shape: f32[2,8], index: 2, kind: input, shape index: {}]
  %s3 = inlined_call_operand.vmem [shape: f32[8,36], index: 3, kind: input, shape index: {}]
  %s4 = inlined_call_operand.vmem [shape: f32[8,1], index: 4, kind: input, shape index: {}]
  %s5 = inlined_call_operand.vmem [shape: f32[8,32], index: 5, kind: input, shape index: {}]
  %s6 = inlined_call_operand.vmem [shape: f32[1,32], index: 6, kind: input, shape index: {}]
  %s7 = inlined_call_operand.vmem [shape: bf16[2048,64], index: 7, kind: input, shape index: {}]
  %s8 = inlined_call_operand.vmem [shape: f32[32,64], index: 8, kind: input, shape index: {}]
  %s9 = inlined_call_operand.vmem [shape: f32[1,64], index: 9, kind: input, shape index: {}]
  %s10 = inlined_call_operand.vmem [shape: f32[1,64], index: 10, kind: input, shape index: {}]
  %s11 = inlined_call_operand.<no memory space> [shape: f32[1,1], index: 11, kind: input, shape index: {}]
  %s12 = inlined_call_operand.vmem [shape: f32[2,1], index: 12, kind: output, shape index: {}]
  %s13 = sld [smem:[#allocation0]]
  $region58: #{kian_net_forward.1} parent=0
    _
  %s15 = ssub.s32 1, %s13
  %s16 = scalar_select 0, %s15, %s13
  %v17 = vstv %s11
  %18 = vst [vmem:[#allocation4] sm:$0x1] %v17
  // Predicated region
  $region2: #{kian_net_forward.1} parent=0 // pred_check
    _
  $region3: #{kian_net_forward.1} parent=0 // pred_check_branch
    %20 = sbr.rel (0) target = $region5
  $region4: #{kian_net_forward.1} parent=0 // pred_region
    _
  $region5: #{kian_net_forward.1} parent=0 // pred_fallthru
    _
  // Predicated region
  $region6: #{kian_net_forward.1} parent=0 // pred_check
    _
  $region7: #{kian_net_forward.1} parent=0 // pred_check_branch
    %22 = sbr.rel (0) target = $region9
  $region8: #{kian_net_forward.1} parent=0 // pred_region
    _
  $region9: #{kian_net_forward.1} parent=0 // pred_fallthru
    _
  // Predicated region
  $region10: #{kian_net_forward.1} parent=0 // pred_check
    _
  $region11: #{kian_net_forward.1} parent=0 // pred_check_branch
    %24 = sbr.rel (0) target = $region13
  $region12: #{kian_net_forward.1} parent=0 // pred_region
    _
  $region13: #{kian_net_forward.1} parent=0 // pred_fallthru
    _
  // Predicated region
  $region14: #{kian_net_forward.1} parent=0 // pred_check
    _
  $region15: #{kian_net_forward.1} parent=0 // pred_check_branch
    %26 = sbr.rel (0) target = $region17
  $region16: #{kian_net_forward.1} parent=0 // pred_region
    _
  $region17: #{kian_net_forward.1} parent=0 // pred_fallthru
    _
  // Predicated region
  $region18: #{kian_net_forward.1} parent=0 // pred_check
    _
  $region19: #{kian_net_forward.1} parent=0 // pred_check_branch
    %28 = sbr.rel (0) target = $region21
  $region20: #{kian_net_forward.1} parent=0 // pred_region
    _
  $region21: #{kian_net_forward.1} parent=0 // pred_fallthru
    _
  // Predicated region
  $region22: #{kian_net_forward.1} parent=0 // pred_check
    _
  $region23: #{kian_net_forward.1} parent=0 // pred_check_branch
    %30 = sbr.rel (0) target = $region25
  $region24: #{kian_net_forward.1} parent=0 // pred_region
    _
  $region25: #{kian_net_forward.1} parent=0 // pred_fallthru
    _
  // Predicated region
  $region26: #{kian_net_forward.1} parent=0 // pred_check
    _
  $region27: #{kian_net_forward.1} parent=0 // pred_check_branch
    %32 = sbr.rel (0) target = $region29
  $region28: #{kian_net_forward.1} parent=0 // pred_region
    _
  $region29: #{kian_net_forward.1} parent=0 // pred_fallthru
    _
  // Predicated region
  $region30: #{kian_net_forward.1} parent=0 // pred_check
    _
  $region31: #{kian_net_forward.1} parent=0 // pred_check_branch
    %34 = sbr.rel (0) target = $region33
  $region32: #{kian_net_forward.1} parent=0 // pred_region
    _
  $region33: #{kian_net_forward.1} parent=0 // pred_fallthru
    _
  // Predicated region
  $region34: #{kian_net_forward.1} parent=0 // pred_check
    _
  $region35: #{kian_net_forward.1} parent=0 // pred_check_branch
    %36 = sbr.rel (0) target = $region37
  $region36: #{kian_net_forward.1} parent=0 // pred_region
    _
  $region37: #{kian_net_forward.1} parent=0 // pred_fallthru
    _
  // Predicated region
  $region38: #{kian_net_forward.1} parent=0 // pred_check
    _
  $region39: #{kian_net_forward.1} parent=0 // pred_check_branch
    %38 = sbr.rel (0) target = $region41
  $region40: #{kian_net_forward.1} parent=0 // pred_region
    _
  $region41: #{kian_net_forward.1} parent=0 // pred_fallthru
    _
  // Predicated region
  $region42: #{kian_net_forward.1} parent=0 // pred_check
    _
  $region43: #{kian_net_forward.1} parent=0 // pred_check_branch
    %40 = sbr.rel (0) target = $region45
  $region44: #{kian_net_forward.1} parent=0 // pred_region
    _
  $region45: #{kian_net_forward.1} parent=0 // pred_fallthru
    _
  // Predicated region
  $region46: #{kian_net_forward.1} parent=0 // pred_check
    _
  $region47: #{kian_net_forward.1} parent=0 // pred_check_branch
    %42 = sbr.rel (0) target = $region49
  $region48: #{kian_net_forward.1} parent=0 // pred_region
    _
  $region49: #{kian_net_forward.1} parent=0 // pred_fallthru
    _
  %v44 = vld [vmem:[%s0] sm:$0xff]
  %v45 = vld [vmem:[%s0 + $0x8] sm:$0xff]
  %v46 = vld [vmem:[%s1] sm:$0xff]
  %v47 = vld [vmem:[%s1 + $0x8] sm:$0xff]
  %v48 = vld [vmem:[%s1 + $0x10] sm:$0xff]
  %v49 = vld [vmem:[%s1 + $0x18] sm:$0xff]
  %v50 = vld [vmem:[%s1 + $0x20] sm:$0x1]
  %v51 = vld [vmem:[%s1 + $0x28] sm:$0x1]
  %v52 = vld [vmem:[%s1 + $0x30] sm:$0x1]
  %v53 = vld [vmem:[%s1 + $0x38] sm:$0x1]
  %v56 = vcombine.high %v44, %v44
  %v57 = vcombine.high %v45, %v45
  %60 = vrot.lane.b32.xlu0 %v44, 17
  %v61 = vpop.permute.xlu0 %60
  %62 = vrot.lane.b32.xlu0 %v56, 17
  %v63 = vpop.permute.xlu0 %62
  %64 = vrot.lane.b32.xlu0 %v45, 17
  %v65 = vpop.permute.xlu0 %64
  %66 = vrot.lane.b32.xlu0 %v57, 17
  %v67 = vpop.permute.xlu0 %66
  %v68 = vlaneseq
  %v69 = vand.u32 %v68, 127
  %vm70 = vcmp.lt.s32.totalorder %v69, 17
  %v71 = vsel %vm70, %v65, %v67
  %v72 = vsel %vm70, %v63, %v65
  %v73 = vsel %vm70, %v61, %v63
  %v74 = vsel %vm70, %v67, %v61
  %v75 = vlaneseq
  %v76 = vshrl.u32 %v75, 7
  %v77 = vsub.s32 0, %v76
  %v78 = vrot.slane %v46, %v77
  %v79 = vlaneseq
  %v80 = vshrl.u32 %v79, 7
  %v81 = vsub.s32 0, %v80
  %v82 = vrot.slane %v47, %v81
  %v83 = vlaneseq
  %v84 = vshrl.u32 %v83, 7
  %v85 = vsub.s32 0, %v84
  %v86 = vrot.slane %v48, %v85
  %v87 = vlaneseq
  %v88 = vshrl.u32 %v87, 7
  %v89 = vsub.s32 0, %v88
  %v90 = vrot.slane %v49, %v89
  %v91 = vmul.f32 %v74, %v78
  %v92 = vmul.f32 %v73, %v82
  %v93 = vmul.f32 %v72, %v86
  %v94 = vmul.f32 %v71, %v90
  %95 = vst [vmem:[#allocation2] sm:$0xf] %v91
  %96 = vst [vmem:[#allocation2 + $0x8] sm:$0xf] %v92
  %97 = vst [vmem:[#allocation2 + $0x10] sm:$0xf] %v93
  %98 = vst [vmem:[#allocation2 + $0x18] sm:$0xf] %v94
  %99 = vrot.lane.b32.xlu0 %v44, 16
  %v100 = vpop.permute.xlu0 %99
  %101 = vrot.lane.b32.xlu0 %v56, 16
  %v102 = vpop.permute.xlu0 %101
  %103 = vrot.lane.b32.xlu0 %v45, 16
  %v104 = vpop.permute.xlu0 %103
  %105 = vrot.lane.b32.xlu0 %v57, 16
  %v106 = vpop.permute.xlu0 %105
  %vm107 = vcmp.lt.s32.totalorder %v69, 16
  %v108 = vsel %vm107, %v104, %v106
  %v109 = vsel %vm107, %v102, %v104
  %v110 = vsel %vm107, %v100, %v102
  %v111 = vsel %vm107, %v106, %v100
  %v112 = vlaneseq
  %v113 = vshrl.u32 %v112, 7
  %v114 = vsub.s32 1, %v113
  %v115 = vrot.slane %v46, %v114
  %v116 = vlaneseq
  %v117 = vshrl.u32 %v116, 7
  %v118 = vsub.s32 1, %v117
  %v119 = vrot.slane %v47, %v118
  %v120 = vlaneseq
  %v121 = vshrl.u32 %v120, 7
  %v122 = vsub.s32 1, %v121
  %v123 = vrot.slane %v48, %v122
  %v124 = vlaneseq
  %v125 = vshrl.u32 %v124, 7
  %v126 = vsub.s32 1, %v125
  %v127 = vrot.slane %v49, %v126
  %v128 = vmul.f32 %v111, %v115
  %v129 = vmul.f32 %v110, %v119
  %v130 = vmul.f32 %v109, %v123
  %v131 = vmul.f32 %v108, %v127
  %v136 = vrot.slane %v128, 4
  %v137 = vrot.slane %v129, 4
  %v138 = vrot.slane %v130, 4
  %v139 = vrot.slane %v131, 4
  %144 = vst [vmem:[#allocation2] sm:$0xf0] %v136
  %145 = vst [vmem:[#allocation2 + $0x8] sm:$0xf0] %v137
  %146 = vst [vmem:[#allocation2 + $0x10] sm:$0xf0] %v138
  %147 = vst [vmem:[#allocation2 + $0x18] sm:$0xf0] %v139
  %148 = vrot.lane.b32.xlu0 %v44, 15
  %v149 = vpop.permute.xlu0 %148
  %150 = vrot.lane.b32.xlu0 %v56, 15
  %v151 = vpop.permute.xlu0 %150
  %152 = vrot.lane.b32.xlu0 %v45, 15
  %v153 = vpop.permute.xlu0 %152
  %154 = vrot.lane.b32.xlu0 %v57, 15
  %v155 = vpop.permute.xlu0 %154
  %vm156 = vcmp.lt.s32.totalorder %v69, 15
  %v157 = vsel %vm156, %v153, %v155
  %v158 = vsel %vm156, %v151, %v153
  %v159 = vsel %vm156, %v149, %v151
  %v160 = vsel %vm156, %v155, %v149
  %v161 = vlaneseq
  %v162 = vshrl.u32 %v161, 7
  %v163 = vsub.s32 2, %v162
  %v164 = vrot.slane %v46, %v163
  %v165 = vlaneseq
  %v166 = vshrl.u32 %v165, 7
  %v167 = vsub.s32 2, %v166
  %v168 = vrot.slane %v47, %v167
  %v169 = vlaneseq
  %v170 = vshrl.u32 %v169, 7
  %v171 = vsub.s32 2, %v170
  %v172 = vrot.slane %v48, %v171
  %v173 = vlaneseq
  %v174 = vshrl.u32 %v173, 7
  %v175 = vsub.s32 2, %v174
  %v176 = vrot.slane %v49, %v175
  %v177 = vmul.f32 %v160, %v164
  %v178 = vmul.f32 %v159, %v168
  %v179 = vmul.f32 %v158, %v172
  %v180 = vmul.f32 %v157, %v176
  %181 = vst [vmem:[#allocation2 + $0x20] sm:$0xf] %v177
  %182 = vst [vmem:[#allocation2 + $0x28] sm:$0xf] %v178
  %183 = vst [vmem:[#allocation2 + $0x30] sm:$0xf] %v179
  %184 = vst [vmem:[#allocation2 + $0x38] sm:$0xf] %v180
  %185 = vrot.lane.b32.xlu0 %v44, 1
  %v186 = vpop.permute.xlu0 %185
  %187 = vrot.lane.b32.xlu0 %v56, 1
  %v188 = vpop.permute.xlu0 %187
  %189 = vrot.lane.b32.xlu0 %v45, 1
  %v190 = vpop.permute.xlu0 %189
  %191 = vrot.lane.b32.xlu0 %v57, 1
  %v192 = vpop.permute.xlu0 %191
  %vm193 = vcmp.lt.s32.totalorder %v69, 1
  %v194 = vsel %vm193, %v190, %v192
  %v195 = vsel %vm193, %v188, %v190
  %v196 = vsel %vm193, %v186, %v188
  %v197 = vsel %vm193, %v192, %v186
  %v198 = vlaneseq
  %v199 = vshrl.u32 %v198, 7
  %v200 = vsub.s32 3, %v199
  %v201 = vrot.slane %v46, %v200
  %v202 = vlaneseq
  %v203 = vshrl.u32 %v202, 7
  %v204 = vsub.s32 3, %v203
  %v205 = vrot.slane %v47, %v204
  %v206 = vlaneseq
  %v207 = vshrl.u32 %v206, 7
  %v208 = vsub.s32 3, %v207
  %v209 = vrot.slane %v48, %v208
  %v210 = vlaneseq
  %v211 = vshrl.u32 %v210, 7
  %v212 = vsub.s32 3, %v211
  %v213 = vrot.slane %v49, %v212
  %v214 = vmul.f32 %v197, %v201
  %v215 = vmul.f32 %v196, %v205
  %v216 = vmul.f32 %v195, %v209
  %v217 = vmul.f32 %v194, %v213
  %v222 = vrot.slane %v214, 4
  %v223 = vrot.slane %v215, 4
  %v224 = vrot.slane %v216, 4
  %v225 = vrot.slane %v217, 4
  %230 = vst [vmem:[#allocation2 + $0x20] sm:$0xf0] %v222
  %231 = vst [vmem:[#allocation2 + $0x28] sm:$0xf0] %v223
  %232 = vst [vmem:[#allocation2 + $0x30] sm:$0xf0] %v224
  %233 = vst [vmem:[#allocation2 + $0x38] sm:$0xf0] %v225
  %v234 = vlaneseq
  %v235 = vshrl.u32 %v234, 7
  %v236 = vsub.s32 4, %v235
  %v237 = vrot.slane %v46, %v236
  %v238 = vlaneseq
  %v239 = vshrl.u32 %v238, 7
  %v240 = vsub.s32 4, %v239
  %v241 = vrot.slane %v47, %v240
  %v242 = vlaneseq
  %v243 = vshrl.u32 %v242, 7
  %v244 = vsub.s32 4, %v243
  %v245 = vrot.slane %v48, %v244
  %v246 = vlaneseq
  %v247 = vshrl.u32 %v246, 7
  %v248 = vsub.s32 4, %v247
  %v249 = vrot.slane %v49, %v248
  %v254 = vcombine.low %v237, %v241
  %v255 = vcombine.low %v245, %v249
  %v258 = vmul.f32 %v44, %v254
  %v259 = vmul.f32 %v45, %v255
  %v262 = vcombine.high %v258, %v258
  %v263 = vcombine.high %v259, %v259
  %266 = vst [vmem:[#allocation2 + $0x40] sm:$0xf] %v258
  %267 = vst [vmem:[#allocation2 + $0x48] sm:$0xf] %v262
  %268 = vst [vmem:[#allocation2 + $0x50] sm:$0xf] %v259
  %269 = vst [vmem:[#allocation2 + $0x58] sm:$0xf] %v263
  %270 = vrot.lane.b32.xlu0 %v44, 127
  %v271 = vpop.permute.xlu0 %270
  %272 = vrot.lane.b32.xlu0 %v56, 127
  %v273 = vpop.permute.xlu0 %272
  %274 = vrot.lane.b32.xlu0 %v45, 127
  %v275 = vpop.permute.xlu0 %274
  %276 = vrot.lane.b32.xlu0 %v57, 127
  %v277 = vpop.permute.xlu0 %276
  %vm278 = vcmp.lt.s32.totalorder %v69, 127
  %v279 = vsel %vm278, %v275, %v277
  %v280 = vsel %vm278, %v273, %v275
  %v281 = vsel %vm278, %v271, %v273
  %v282 = vsel %vm278, %v277, %v271
  %v283 = vlaneseq
  %v284 = vshrl.u32 %v283, 7
  %v285 = vsub.s32 5, %v284
  %v286 = vrot.slane %v46, %v285
  %v287 = vlaneseq
  %v288 = vshrl.u32 %v287, 7
  %v289 = vsub.s32 5, %v288
  %v290 = vrot.slane %v47, %v289
  %v291 = vlaneseq
  %v292 = vshrl.u32 %v291, 7
  %v293 = vsub.s32 5, %v292
  %v294 = vrot.slane %v48, %v293
  %v295 = vlaneseq
  %v296 = vshrl.u32 %v295, 7
  %v297 = vsub.s32 5, %v296
  %v298 = vrot.slane %v49, %v297
  %v299 = vmul.f32 %v281, %v286
  %v300 = vmul.f32 %v280, %v290
  %v301 = vmul.f32 %v279, %v294
  %v302 = vmul.f32 %v282, %v298
  %v307 = vrot.slane %v299, 4
  %v308 = vrot.slane %v300, 4
  %v309 = vrot.slane %v301, 4
  %v310 = vrot.slane %v302, 4
  %315 = vst [vmem:[#allocation2 + $0x40] sm:$0xf0] %v307
  %316 = vst [vmem:[#allocation2 + $0x48] sm:$0xf0] %v308
  %317 = vst [vmem:[#allocation2 + $0x50] sm:$0xf0] %v309
  %318 = vst [vmem:[#allocation2 + $0x58] sm:$0xf0] %v310
  %319 = vrot.lane.b32.xlu0 %v44, 113
  %v320 = vpop.permute.xlu0 %319
  %321 = vrot.lane.b32.xlu0 %v56, 113
  %v322 = vpop.permute.xlu0 %321
  %323 = vrot.lane.b32.xlu0 %v45, 113
  %v324 = vpop.permute.xlu0 %323
  %325 = vrot.lane.b32.xlu0 %v57, 113
  %v326 = vpop.permute.xlu0 %325
  %vm327 = vcmp.lt.s32.totalorder %v69, 113
  %v328 = vsel %vm327, %v324, %v326
  %v329 = vsel %vm327, %v322, %v324
  %v330 = vsel %vm327, %v320, %v322
  %v331 = vsel %vm327, %v326, %v320
  %v332 = vlaneseq
  %v333 = vshrl.u32 %v332, 7
  %v334 = vsub.s32 6, %v333
  %v335 = vrot.slane %v46, %v334
  %v336 = vlaneseq
  %v337 = vshrl.u32 %v336, 7
  %v338 = vsub.s32 6, %v337
  %v339 = vrot.slane %v47, %v338
  %v340 = vlaneseq
  %v341 = vshrl.u32 %v340, 7
  %v342 = vsub.s32 6, %v341
  %v343 = vrot.slane %v48, %v342
  %v344 = vlaneseq
  %v345 = vshrl.u32 %v344, 7
  %v346 = vsub.s32 6, %v345
  %v347 = vrot.slane %v49, %v346
  %v348 = vmul.f32 %v330, %v335
  %v349 = vmul.f32 %v329, %v339
  %v350 = vmul.f32 %v328, %v343
  %v351 = vmul.f32 %v331, %v347
  %352 = vst [vmem:[#allocation2 + $0x60] sm:$0xf] %v348
  %353 = vst [vmem:[#allocation2 + $0x68] sm:$0xf] %v349
  %354 = vst [vmem:[#allocation2 + $0x70] sm:$0xf] %v350
  %355 = vst [vmem:[#allocation2 + $0x78] sm:$0xf] %v351
  %356 = vrot.lane.b32.xlu0 %v44, 112
  %v357 = vpop.permute.xlu0 %356
  %358 = vrot.lane.b32.xlu0 %v56, 112
  %v359 = vpop.permute.xlu0 %358
  %360 = vrot.lane.b32.xlu0 %v45, 112
  %v361 = vpop.permute.xlu0 %360
  %362 = vrot.lane.b32.xlu0 %v57, 112
  %v363 = vpop.permute.xlu0 %362
  %vm364 = vcmp.lt.s32.totalorder %v69, 112
  %v365 = vsel %vm364, %v361, %v363
  %v366 = vsel %vm364, %v359, %v361
  %v367 = vsel %vm364, %v357, %v359
  %v368 = vsel %vm364, %v363, %v357
  %v369 = vlaneseq
  %v370 = vshrl.u32 %v369, 7
  %v371 = vsub.s32 7, %v370
  %v372 = vrot.slane %v46, %v371
  %v373 = vlaneseq
  %v374 = vshrl.u32 %v373, 7
  %v375 = vsub.s32 7, %v374
  %v376 = vrot.slane %v47, %v375
  %v377 = vlaneseq
  %v378 = vshrl.u32 %v377, 7
  %v379 = vsub.s32 7, %v378
  %v380 = vrot.slane %v48, %v379
  %v381 = vlaneseq
  %v382 = vshrl.u32 %v381, 7
  %v383 = vsub.s32 7, %v382
  %v384 = vrot.slane %v49, %v383
  %v385 = vmul.f32 %v367, %v372
  %v386 = vmul.f32 %v366, %v376
  %v387 = vmul.f32 %v365, %v380
  %v388 = vmul.f32 %v368, %v384
  %v393 = vrot.slane %v385, 4
  %v394 = vrot.slane %v386, 4
  %v395 = vrot.slane %v387, 4
  %v396 = vrot.slane %v388, 4
  %401 = vst [vmem:[#allocation2 + $0x60] sm:$0xf0] %v393
  %402 = vst [vmem:[#allocation2 + $0x68] sm:$0xf0] %v394
  %403 = vst [vmem:[#allocation2 + $0x70] sm:$0xf0] %v395
  %404 = vst [vmem:[#allocation2 + $0x78] sm:$0xf0] %v396
  %405 = vrot.lane.b32.xlu0 %v44, 111
  %v406 = vpop.permute.xlu0 %405
  %407 = vrot.lane.b32.xlu0 %v56, 111
  %v408 = vpop.permute.xlu0 %407
  %409 = vrot.lane.b32.xlu0 %v45, 111
  %v410 = vpop.permute.xlu0 %409
  %411 = vrot.lane.b32.xlu0 %v57, 111
  %v412 = vpop.permute.xlu0 %411
  %vm413 = vcmp.lt.s32.totalorder %v69, 111
  %v414 = vsel %vm413, %v410, %v412
  %v415 = vsel %vm413, %v408, %v410
  %v416 = vsel %vm413, %v406, %v408
  %v417 = vsel %vm413, %v412, %v406
  %v418 = vlaneseq
  %v419 = vshrl.u32 %v418, 7
  %v420 = vsub.s32 0, %v419
  %v421 = vrot.slane %v50, %v420
  %v422 = vlaneseq
  %v423 = vshrl.u32 %v422, 7
  %v424 = vsub.s32 0, %v423
  %v425 = vrot.slane %v51, %v424
  %v426 = vlaneseq
  %v427 = vshrl.u32 %v426, 7
  %v428 = vsub.s32 0, %v427
  %v429 = vrot.slane %v52, %v428
  %v430 = vlaneseq
  %v431 = vshrl.u32 %v430, 7
  %v432 = vsub.s32 0, %v431
  %v433 = vrot.slane %v53, %v432
  %v434 = vmul.f32 %v416, %v421
  %v435 = vmul.f32 %v415, %v425
  %v436 = vmul.f32 %v414, %v429
  %v437 = vmul.f32 %v417, %v433
  %438 = vst [vmem:[#allocation2 + $0x80] sm:$0xf] %v434
  %439 = vst [vmem:[#allocation2 + $0x88] sm:$0xf] %v435
  %440 = vst [vmem:[#allocation2 + $0x90] sm:$0xf] %v436
  %441 = vst [vmem:[#allocation2 + $0x98] sm:$0xf] %v437
  %v442 = vld [vmem:[%s3] sm:$0xff]
  %v443 = vld [vmem:[#allocation2] sm:$0xff]
  %v444 = vld [vmem:[#allocation2 + $0x8] sm:$0xff]
  %v445 = vld [vmem:[#allocation2 + $0x10] sm:$0xff]
  %v446 = vld [vmem:[#allocation2 + $0x18] sm:$0xff]
  %v447 = vld [vmem:[#allocation2 + $0x20] sm:$0xff]
  %v448 = vld [vmem:[#allocation2 + $0x28] sm:$0xff]
  %v449 = vld [vmem:[#allocation2 + $0x30] sm:$0xff]
  %v450 = vld [vmem:[#allocation2 + $0x38] sm:$0xff]
  %v451 = vld [vmem:[#allocation2 + $0x40] sm:$0xff]
  %v452 = vld [vmem:[#allocation2 + $0x48] sm:$0xff]
  %v453 = vld [vmem:[#allocation2 + $0x50] sm:$0xff]
  %v454 = vld [vmem:[#allocation2 + $0x58] sm:$0xff]
  %v455 = vld [vmem:[#allocation2 + $0x60] sm:$0xff]
  %v456 = vld [vmem:[#allocation2 + $0x68] sm:$0xff]
  %v457 = vld [vmem:[#allocation2 + $0x70] sm:$0xff]
  %v458 = vld [vmem:[#allocation2 + $0x78] sm:$0xff]
  %v459 = vld [vmem:[#allocation2 + $0x80] sm:$0xf]
  %v460 = vld [vmem:[#allocation2 + $0x88] sm:$0xf]
  %v461 = vld [vmem:[#allocation2 + $0x90] sm:$0xf]
  %v462 = vld [vmem:[#allocation2 + $0x98] sm:$0xf]
  %v463 = vld [vmem:[%s4] sm:$0xff]
  %465 = vset.pattern.permute.xlu0 0
  %466 = vperm.xlu0 %465, %v463
  %v467 = vpop.permute.xlu0 %466
  %vm469 = vcmask 293888
  %v471 = vsel %vm469, %v442, 0
  %vm473 = vcmask 1043456
  %v475 = vsel %vm473, %v459, 0
  %v478 = vsel %vm473, %v460, 0
  %v481 = vsel %vm473, %v461, 0
  %v484 = vsel %vm473, %v462, 0
  %486 = vmatprep.subr.mxu0 %v444
  %487 = vmatpush1.msra.mxu0 %v443
  %488 = vmatprep.subr.mxu0 %v448
  %489 = vmatpush1.msra.mxu0 %v447
  %490 = vmatprep.subr.mxu0 %v452
  %491 = vmatpush1.msra.mxu0 %v451
  %492 = vmatprep.subr.mxu0 %v456
  %493 = vmatpush1.msra.mxu0 %v455
  %494 = vmatprep.subr.mxu0 %v478
  %495 = vmatpush1.msra.mxu0 %v475
  %496 = vmatprep.subr.mxu0 0.0
  %497 = vmatpush1.msra.mxu0 0.0
  %498 = vmatprep.subr.mxu0 0.0
  %499 = vmatpush1.msra.mxu0 0.0
  %500 = vmatprep.subr.mxu0 0.0
  %501 = vmatpush1.msra.mxu0 0.0
  %502 = vmatprep.subr.mxu0 0.0
  %503 = vmatpush1.msra.mxu0 0.0
  %504 = vmatprep.subr.mxu0 0.0
  %505 = vmatpush1.msra.mxu0 0.0
  %506 = vmatprep.subr.mxu0 0.0
  %507 = vmatpush1.msra.mxu0 0.0
  %508 = vmatprep.subr.mxu0 0.0
  %509 = vmatpush1.msra.mxu0 0.0
  %510 = vmatprep.subr.mxu0 0.0
  %511 = vmatpush1.msra.mxu0 0.0
  %512 = vmatprep.subr.mxu0 0.0
  %513 = vmatpush1.msra.mxu0 0.0
  %514 = vmatprep.subr.mxu0 0.0
  %515 = vmatpush1.msra.mxu0 0.0
  %516 = vmatprep.subr.mxu0 0.0
  %517 = vmatpush1.msra.mxu0 0.0
  %518 = vmatprep.subr.mxu0 0.0
  %519 = vmatpush1.msra.mxu0 0.0
  %520 = vmatprep.subr.mxu0 0.0
  %521 = vmatpush1.msra.mxu0 0.0
  %522 = vmatprep.subr.mxu0 0.0
  %523 = vmatpush1.msra.mxu0 0.0
  %524 = vmatprep.subr.mxu0 0.0
  %525 = vmatpush1.msra.mxu0 0.0
  %526 = vmatprep.subr.mxu0 0.0
  %527 = vmatpush1.msra.mxu0 0.0
  %528 = vmatprep.subr.mxu0 0.0
  %529 = vmatpush1.msra.mxu0 0.0
  %530 = vmatprep.subr.mxu0 0.0
  %531 = vmatpush1.msra.mxu0 0.0
  %532 = vmatprep.subr.mxu0 0.0
  %533 = vmatpush1.msra.mxu0 0.0
  %534 = vmatprep.subr.mxu0 0.0
  %535 = vmatpush1.msra.mxu0 0.0
  %536 = vmatprep.subr.mxu0 0.0
  %537 = vmatpush1.msra.mxu0 0.0
  %538 = vmatprep.subr.mxu0 0.0
  %539 = vmatpush1.msra.mxu0 0.0
  %540 = vmatprep.subr.mxu0 0.0
  %541 = vmatpush1.msra.mxu0 0.0
  %542 = vmatprep.subr.mxu0 0.0
  %543 = vmatpush1.msra.mxu0 0.0
  %544 = vmatprep.subr.mxu0 0.0
  %545 = vmatpush1.msra.mxu0 0.0
  %546 = vmatprep.subr.mxu0 0.0
  %547 = vmatpush1.msra.mxu0 0.0
  %548 = vmatprep.subr.mxu0 0.0
  %549 = vmatpush1.msra.mxu0 0.0
  %550 = vmatprep.mubr.f32.mxu0 0.0
  %551 = vmatmul.mubr.f32.gmra.mrb[0].mxu0 %v471
  %v552 = vpop.f32.mrb[0].mxu0
  %v553 = vadd.f32 %v467, %v552
  %v554 = vpop.f32.mrb[0].mxu0
  %v555 = vadd.f32 %v467, %v554
  %556 = vdwg.mxu0
  %557 = vmatprep.subr.mxu0 %v446
  %558 = vmatpush1.msra.mxu0 %v445
  %559 = vmatprep.subr.mxu0 %v450
  %560 = vmatpush1.msra.mxu0 %v449
  %561 = vmatprep.subr.mxu0 %v454
  %562 = vmatpush1.msra.mxu0 %v453
  %563 = vmatprep.subr.mxu0 %v458
  %564 = vmatpush1.msra.mxu0 %v457
  %565 = vmatprep.subr.mxu0 %v484
  %566 = vmatpush1.msra.mxu0 %v481
  %567 = vmatprep.subr.mxu0 0.0
  %568 = vmatpush1.msra.mxu0 0.0
  %569 = vmatprep.subr.mxu0 0.0
  %570 = vmatpush1.msra.mxu0 0.0
  %571 = vmatprep.subr.mxu0 0.0
  %572 = vmatpush1.msra.mxu0 0.0
  %573 = vmatprep.subr.mxu0 0.0
  %574 = vmatpush1.msra.mxu0 0.0
  %575 = vmatprep.subr.mxu0 0.0
  %576 = vmatpush1.msra.mxu0 0.0
  %577 = vmatprep.subr.mxu0 0.0
  %578 = vmatpush1.msra.mxu0 0.0
  %579 = vmatprep.subr.mxu0 0.0
  %580 = vmatpush1.msra.mxu0 0.0
  %581 = vmatprep.subr.mxu0 0.0
  %582 = vmatpush1.msra.mxu0 0.0
  %583 = vmatprep.subr.mxu0 0.0
  %584 = vmatpush1.msra.mxu0 0.0
  %585 = vmatprep.subr.mxu0 0.0
  %586 = vmatpush1.msra.mxu0 0.0
  %587 = vmatprep.subr.mxu0 0.0
  %588 = vmatpush1.msra.mxu0 0.0
  %589 = vmatprep.subr.mxu0 0.0
  %590 = vmatpush1.msra.mxu0 0.0
  %591 = vmatprep.subr.mxu0 0.0
  %592 = vmatpush1.msra.mxu0 0.0
  %593 = vmatprep.subr.mxu0 0.0
  %594 = vmatpush1.msra.mxu0 0.0
  %595 = vmatprep.subr.mxu0 0.0
  %596 = vmatpush1.msra.mxu0 0.0
  %597 = vmatprep.subr.mxu0 0.0
  %598 = vmatpush1.msra.mxu0 0.0
  %599 = vmatprep.subr.mxu0 0.0
  %600 = vmatpush1.msra.mxu0 0.0
  %601 = vmatprep.subr.mxu0 0.0
  %602 = vmatpush1.msra.mxu0 0.0
  %603 = vmatprep.subr.mxu0 0.0
  %604 = vmatpush1.msra.mxu0 0.0
  %605 = vmatprep.subr.mxu0 0.0
  %606 = vmatpush1.msra.mxu0 0.0
  %607 = vmatprep.subr.mxu0 0.0
  %608 = vmatpush1.msra.mxu0 0.0
  %609 = vmatprep.subr.mxu0 0.0
  %610 = vmatpush1.msra.mxu0 0.0
  %611 = vmatprep.subr.mxu0 0.0
  %612 = vmatpush1.msra.mxu0 0.0
  %613 = vmatprep.subr.mxu0 0.0
  %614 = vmatpush1.msra.mxu0 0.0
  %615 = vmatprep.subr.mxu0 0.0
  %616 = vmatpush1.msra.mxu0 0.0
  %617 = vmatprep.subr.mxu0 0.0
  %618 = vmatpush1.msra.mxu0 0.0
  %619 = vmatprep.subr.mxu0 0.0
  %620 = vmatpush1.msra.mxu0 0.0
  %621 = vmatprep.mubr.f32.mxu0 0.0
  %622 = vmatmul.mubr.f32.gmra.mrb[0].mxu0 %v471
  %v623 = vpop.f32.mrb[0].mxu0
  %v624 = vadd.f32 %v467, %v623
  %v625 = vpop.f32.mrb[0].mxu0
  %v626 = vadd.f32 %v467, %v625
  %627 = vdwg.mxu0
  %v628 = vmax.f32 %v553, 0.0
  %v629 = vmax.f32 %v555, 0.0
  %v630 = vmax.f32 %v624, 0.0
  %v631 = vmax.f32 %v626, 0.0
  %v634 = vcombine.low %v628, %v629
  %v636 = vunpack.c.l.s4 1966171168
  %v637 = vunpack.c.0.s8 %v636
  %v638 = vlaneseq
  %v639 = vshrl.u32 %v638, 7
  %v640 = vsub.s32 %v637, %v639
  %v641 = vrot.slane %v634, %v640
  %v643 = vunpack.c.l.s4 1966171168
  %v644 = vunpack.c.0.s8 %v643
  %v645 = vlaneseq
  %v646 = vshrl.u32 %v645, 7
  %v647 = vsub.s32 %v644, %v646
  %v648 = vrot.slane %v641, %v647
  %v650 = vlaneseq
  %vm651 = vcmp.ge.s32.totalorder %v650, 0
  %vm652 = vcmp.lt.s32.totalorder %v650, 256
  %vm653 = vmand %vm651, %vm652
  %654 = vst.msk [vmem:[#allocation3] ss:$2 sm:$0x3] %vm653, %v648
  %v655 = vcombine.high %v641, %v641
  %v657 = vunpack.c.l.s4 1966171168
  %v658 = vunpack.c.0.s8 %v657
  %v659 = vlaneseq
  %v660 = vshrl.u32 %v659, 7
  %v661 = vsub.s32 %v658, %v660
  %v662 = vrot.slane %v655, %v661
  %s664 = scalar_lea.vmem [#allocation3], 4
  %665 = vst.msk [vmem:[%s664] ss:$2 sm:$0x3] %vm653, %v662
  %v666 = vcombine.high %v648, %v648
  %s668 = scalar_lea.vmem [#allocation3], 8
  %669 = vst.msk [vmem:[%s668] ss:$2 sm:$0x3] %vm653, %v666
  %v670 = vcombine.high %v662, %v662
  %s672 = scalar_lea.vmem [#allocation3], 12
  %673 = vst.msk [vmem:[%s672] ss:$2 sm:$0x3] %vm653, %v670
  %v674 = vcombine.high %v628, %v629
  %v676 = vunpack.c.l.s4 1966171168
  %v677 = vunpack.c.0.s8 %v676
  %v678 = vlaneseq
  %v679 = vshrl.u32 %v678, 7
  %v680 = vsub.s32 %v677, %v679
  %v681 = vrot.slane %v674, %v680
  %v683 = vunpack.c.l.s4 1966171168
  %v684 = vunpack.c.0.s8 %v683
  %v685 = vlaneseq
  %v686 = vshrl.u32 %v685, 7
  %v687 = vsub.s32 %v684, %v686
  %v688 = vrot.slane %v681, %v687
  %s690 = scalar_lea.vmem [#allocation3], 16
  %691 = vst.msk [vmem:[%s690] ss:$2 sm:$0x3] %vm653, %v688
  %v692 = vcombine.high %v681, %v681
  %v694 = vunpack.c.l.s4 1966171168
  %v695 = vunpack.c.0.s8 %v694
  %v696 = vlaneseq
  %v697 = vshrl.u32 %v696, 7
  %v698 = vsub.s32 %v695, %v697
  %v699 = vrot.slane %v692, %v698
  %s701 = scalar_lea.vmem [#allocation3], 20
  %702 = vst.msk [vmem:[%s701] ss:$2 sm:$0x3] %vm653, %v699
  %v703 = vcombine.high %v688, %v688
  %s705 = scalar_lea.vmem [#allocation3], 24
  %706 = vst.msk [vmem:[%s705] ss:$2 sm:$0x3] %vm653, %v703
  %v707 = vcombine.high %v699, %v699
  %s709 = scalar_lea.vmem [#allocation3], 28
  %710 = vst.msk [vmem:[%s709] ss:$2 sm:$0x3] %vm653, %v707
  %v713 = vcombine.low %v630, %v631
  %v715 = vunpack.c.l.s4 1966171168
  %v716 = vunpack.c.0.s8 %v715
  %v717 = vlaneseq
  %v718 = vshrl.u32 %v717, 7
  %v719 = vsub.s32 %v716, %v718
  %v720 = vrot.slane %v713, %v719
  %v722 = vunpack.c.l.s4 1966171168
  %v723 = vunpack.c.0.s8 %v722
  %v724 = vlaneseq
  %v725 = vshrl.u32 %v724, 7
  %v726 = vsub.s32 %v723, %v725
  %v727 = vrot.slane %v720, %v726
  %s729 = scalar_lea.vmem [#allocation3], 1
  %730 = vst.msk [vmem:[%s729] ss:$2 sm:$0x3] %vm653, %v727
  %v731 = vcombine.high %v720, %v720
  %v733 = vunpack.c.l.s4 1966171168
  %v734 = vunpack.c.0.s8 %v733
  %v735 = vlaneseq
  %v736 = vshrl.u32 %v735, 7
  %v737 = vsub.s32 %v734, %v736
  %v738 = vrot.slane %v731, %v737
  %s740 = scalar_lea.vmem [#allocation3], 5
  %741 = vst.msk [vmem:[%s740] ss:$2 sm:$0x3] %vm653, %v738
  %v742 = vcombine.high %v727, %v727
  %s744 = scalar_lea.vmem [#allocation3], 9
  %745 = vst.msk [vmem:[%s744] ss:$2 sm:$0x3] %vm653, %v742
  %v746 = vcombine.high %v738, %v738
  %s748 = scalar_lea.vmem [#allocation3], 13
  %749 = vst.msk [vmem:[%s748] ss:$2 sm:$0x3] %vm653, %v746
  %v750 = vcombine.high %v630, %v631
  %v752 = vunpack.c.l.s4 1966171168
  %v753 = vunpack.c.0.s8 %v752
  %v754 = vlaneseq
  %v755 = vshrl.u32 %v754, 7
  %v756 = vsub.s32 %v753, %v755
  %v757 = vrot.slane %v750, %v756
  %v759 = vunpack.c.l.s4 1966171168
  %v760 = vunpack.c.0.s8 %v759
  %v761 = vlaneseq
  %v762 = vshrl.u32 %v761, 7
  %v763 = vsub.s32 %v760, %v762
  %v764 = vrot.slane %v757, %v763
  %s766 = scalar_lea.vmem [#allocation3], 17
  %767 = vst.msk [vmem:[%s766] ss:$2 sm:$0x3] %vm653, %v764
  %v768 = vcombine.high %v757, %v757
  %v770 = vunpack.c.l.s4 1966171168
  %v771 = vunpack.c.0.s8 %v770
  %v772 = vlaneseq
  %v773 = vshrl.u32 %v772, 7
  %v774 = vsub.s32 %v771, %v773
  %v775 = vrot.slane %v768, %v774
  %s777 = scalar_lea.vmem [#allocation3], 21
  %778 = vst.msk [vmem:[%s777] ss:$2 sm:$0x3] %vm653, %v775
  %v779 = vcombine.high %v764, %v764
  %s781 = scalar_lea.vmem [#allocation3], 25
  %782 = vst.msk [vmem:[%s781] ss:$2 sm:$0x3] %vm653, %v779
  %v783 = vcombine.high %v775, %v775
  %s785 = scalar_lea.vmem [#allocation3], 29
  %786 = vst.msk [vmem:[%s785] ss:$2 sm:$0x3] %vm653, %v783
  %v787 = vld [vmem:[%s2] sm:$0x3]
  %v788 = vld [vmem:[%s5] sm:$0xff]
  %v789 = vld [vmem:[%s6] sm:$0x1]
  %v791 = vlaneseq
  %v792 = vshrl.u32 %v791, 7
  %v793 = vsub.s32 0, %v792
  %v794 = vrot.slane %v789, %v793
  %vm796 = vcmask 64512
  %v798 = vsel %vm796, %v787, 0
  %800 = vmatprep.subr.mxu0 0.0
  %801 = vmatpush1.msra.mxu0 %v788
  %802 = vmatprep.subr.mxu0 0.0
  %803 = vmatpush1.msra.mxu0 0.0
  %804 = vmatprep.subr.mxu0 0.0
  %805 = vmatpush1.msra.mxu0 0.0
  %806 = vmatprep.subr.mxu0 0.0
  %807 = vmatpush1.msra.mxu0 0.0
  %808 = vmatprep.subr.mxu0 0.0
  %809 = vmatpush1.msra.mxu0 0.0
  %810 = vmatprep.subr.mxu0 0.0
  %811 = vmatpush1.msra.mxu0 0.0
  %812 = vmatprep.subr.mxu0 0.0
  %813 = vmatpush1.msra.mxu0 0.0
  %814 = vmatprep.subr.mxu0 0.0
  %815 = vmatpush1.msra.mxu0 0.0
  %816 = vmatprep.subr.mxu0 0.0
  %817 = vmatpush1.msra.mxu0 0.0
  %818 = vmatprep.subr.mxu0 0.0
  %819 = vmatpush1.msra.mxu0 0.0
  %820 = vmatprep.subr.mxu0 0.0
  %821 = vmatpush1.msra.mxu0 0.0
  %822 = vmatprep.subr.mxu0 0.0
  %823 = vmatpush1.msra.mxu0 0.0
  %824 = vmatprep.subr.mxu0 0.0
  %825 = vmatpush1.msra.mxu0 0.0
  %826 = vmatprep.subr.mxu0 0.0
  %827 = vmatpush1.msra.mxu0 0.0
  %828 = vmatprep.subr.mxu0 0.0
  %829 = vmatpush1.msra.mxu0 0.0
  %830 = vmatprep.subr.mxu0 0.0
  %831 = vmatpush1.msra.mxu0 0.0
  %832 = vmatprep.subr.mxu0 0.0
  %833 = vmatpush1.msra.mxu0 0.0
  %834 = vmatprep.subr.mxu0 0.0
  %835 = vmatpush1.msra.mxu0 0.0
  %836 = vmatprep.subr.mxu0 0.0
  %837 = vmatpush1.msra.mxu0 0.0
  %838 = vmatprep.subr.mxu0 0.0
  %839 = vmatpush1.msra.mxu0 0.0
  %840 = vmatprep.subr.mxu0 0.0
  %841 = vmatpush1.msra.mxu0 0.0
  %842 = vmatprep.subr.mxu0 0.0
  %843 = vmatpush1.msra.mxu0 0.0
  %844 = vmatprep.subr.mxu0 0.0
  %845 = vmatpush1.msra.mxu0 0.0
  %846 = vmatprep.subr.mxu0 0.0
  %847 = vmatpush1.msra.mxu0 0.0
  %848 = vmatprep.subr.mxu0 0.0
  %849 = vmatpush1.msra.mxu0 0.0
  %850 = vmatprep.subr.mxu0 0.0
  %851 = vmatpush1.msra.mxu0 0.0
  %852 = vmatprep.subr.mxu0 0.0
  %853 = vmatpush1.msra.mxu0 0.0
  %854 = vmatprep.subr.mxu0 0.0
  %855 = vmatpush1.msra.mxu0 0.0
  %856 = vmatprep.subr.mxu0 0.0
  %857 = vmatpush1.msra.mxu0 0.0
  %858 = vmatprep.subr.mxu0 0.0
  %859 = vmatpush1.msra.mxu0 0.0
  %860 = vmatprep.subr.mxu0 0.0
  %861 = vmatpush1.msra.mxu0 0.0
  %862 = vmatprep.subr.mxu0 0.0
  %863 = vmatpush1.msra.mxu0 0.0
  %864 = vmatprep.mubr.f32.mxu0 0.0
  %865 = vmatmul.mubr.f32.gmra.mrb[0].mxu0 %v798
  %v866 = vpop.f32.mrb[0].mxu0
  %v867 = vadd.f32 %v794, %v866
  %v868 = vpop.f32.mrb[0].mxu0
  %869 = vdwg.mxu0
  %v870 = vmax.f32 %v867, 0.0
  %v871 = vld [vmem:[#allocation3] sm:$0xff]
  %v872 = vld [vmem:[#allocation3 + $0x8] sm:$0xff]
  %v873 = vld [vmem:[#allocation3 + $0x10] sm:$0xff]
  %v874 = vld [vmem:[#allocation3 + $0x18] sm:$0xff]
  %v879 = vcombine.high %v871, %v871
  %v881 = vunpack.c.l.s4 1983009808
  %v882 = vunpack.c.0.s8 %v881
  %v883 = vlaneseq
  %v884 = vshrl.u32 %v883, 7
  %v885 = vsub.s32 %v882, %v884
  %v886 = vrot.slane %v871, %v885
  %v888 = vunpack.c.l.s4 1983009808
  %v889 = vunpack.c.0.s8 %v888
  %v890 = vlaneseq
  %v891 = vshrl.u32 %v890, 7
  %v892 = vsub.s32 %v889, %v891
  %v893 = vrot.slane %v879, %v892
  %v894 = vcombine.high %v886, %v886
  %v895 = vcombine.high %v893, %v893
  %v896 = vcombine.high %v872, %v872
  %v898 = vunpack.c.l.s4 1983009808
  %v899 = vunpack.c.0.s8 %v898
  %v900 = vlaneseq
  %v901 = vshrl.u32 %v900, 7
  %v902 = vsub.s32 %v899, %v901
  %v903 = vrot.slane %v872, %v902
  %v905 = vunpack.c.l.s4 1983009808
  %v906 = vunpack.c.0.s8 %v905
  %v907 = vlaneseq
  %v908 = vshrl.u32 %v907, 7
  %v909 = vsub.s32 %v906, %v908
  %v910 = vrot.slane %v896, %v909
  %v911 = vcombine.high %v903, %v903
  %v912 = vcombine.high %v910, %v910
  %v913 = vcombine.high %v873, %v873
  %v915 = vunpack.c.l.s4 1983009808
  %v916 = vunpack.c.0.s8 %v915
  %v917 = vlaneseq
  %v918 = vshrl.u32 %v917, 7
  %v919 = vsub.s32 %v916, %v918
  %v920 = vrot.slane %v873, %v919
  %v922 = vunpack.c.l.s4 1983009808
  %v923 = vunpack.c.0.s8 %v922
  %v924 = vlaneseq
  %v925 = vshrl.u32 %v924, 7
  %v926 = vsub.s32 %v923, %v925
  %v927 = vrot.slane %v913, %v926
  %v928 = vcombine.high %v920, %v920
  %v929 = vcombine.high %v927, %v927
  %v930 = vcombine.high %v874, %v874
  %v932 = vunpack.c.l.s4 1983009808
  %v933 = vunpack.c.0.s8 %v932
  %v934 = vlaneseq
  %v935 = vshrl.u32 %v934, 7
  %v936 = vsub.s32 %v933, %v935
  %v937 = vrot.slane %v874, %v936
  %v939 = vunpack.c.l.s4 1983009808
  %v940 = vunpack.c.0.s8 %v939
  %v941 = vlaneseq
  %v942 = vshrl.u32 %v941, 7
  %v943 = vsub.s32 %v940, %v942
  %v944 = vrot.slane %v930, %v943
  %v945 = vcombine.high %v937, %v937
  %v946 = vcombine.high %v944, %v944
  %v963 = vpack.c.bf16 %v886, %v886
  %v964 = vpack.c.bf16 %v894, %v894
  %v965 = vpack.c.bf16 %v893, %v893
  %v966 = vpack.c.bf16 %v895, %v895
  %v967 = vpack.c.bf16 %v903, %v903
  %v968 = vpack.c.bf16 %v911, %v911
  %v969 = vpack.c.bf16 %v910, %v910
  %v970 = vpack.c.bf16 %v912, %v912
  %v971 = vpack.c.bf16 %v920, %v920
  %v972 = vpack.c.bf16 %v928, %v928
  %v973 = vpack.c.bf16 %v927, %v927
  %v974 = vpack.c.bf16 %v929, %v929
  %v975 = vpack.c.bf16 %v937, %v937
  %v976 = vpack.c.bf16 %v945, %v945
  %v977 = vpack.c.bf16 %v944, %v944
  %v978 = vpack.c.bf16 %v946, %v946
  %v979 = vld [vmem:[%s7] sm:$0xf]
  %v980 = vld [vmem:[%s7 + $0x4] sm:$0xf]
  %v981 = vld [vmem:[%s7 + $0x8] sm:$0xf]
  %v982 = vld [vmem:[%s7 + $0xc] sm:$0xf]
  %v983 = vld [vmem:[%s7 + $0x10] sm:$0xf]
  %v984 = vld [vmem:[%s7 + $0x14] sm:$0xf]
  %v985 = vld [vmem:[%s7 + $0x18] sm:$0xf]
  %v986 = vld [vmem:[%s7 + $0x1c] sm:$0xf]
  %v987 = vld [vmem:[%s7 + $0x20] sm:$0xf]
  %v988 = vld [vmem:[%s7 + $0x24] sm:$0xf]
  %v989 = vld [vmem:[%s7 + $0x28] sm:$0xf]
  %v990 = vld [vmem:[%s7 + $0x2c] sm:$0xf]
  %v991 = vld [vmem:[%s7 + $0x30] sm:$0xf]
  %v992 = vld [vmem:[%s7 + $0x34] sm:$0xf]
  %v993 = vld [vmem:[%s7 + $0x38] sm:$0xf]
  %v994 = vld [vmem:[%s7 + $0x3c] sm:$0xf]
  %v995 = vld [vmem:[%s7 + $0x40] sm:$0xf]
  %v996 = vld [vmem:[%s7 + $0x44] sm:$0xf]
  %v997 = vld [vmem:[%s7 + $0x48] sm:$0xf]
  %v998 = vld [vmem:[%s7 + $0x4c] sm:$0xf]
  %v999 = vld [vmem:[%s7 + $0x50] sm:$0xf]
  %v1000 = vld [vmem:[%s7 + $0x54] sm:$0xf]
  %v1001 = vld [vmem:[%s7 + $0x58] sm:$0xf]
  %v1002 = vld [vmem:[%s7 + $0x5c] sm:$0xf]
  %v1003 = vld [vmem:[%s7 + $0x60] sm:$0xf]
  %v1004 = vld [vmem:[%s7 + $0x64] sm:$0xf]
  %v1005 = vld [vmem:[%s7 + $0x68] sm:$0xf]
  %v1006 = vld [vmem:[%s7 + $0x6c] sm:$0xf]
  %v1007 = vld [vmem:[%s7 + $0x70] sm:$0xf]
  %v1008 = vld [vmem:[%s7 + $0x74] sm:$0xf]
  %v1009 = vld [vmem:[%s7 + $0x78] sm:$0xf]
  %v1010 = vld [vmem:[%s7 + $0x7c] sm:$0xf]
  %v1011 = vld [vmem:[%s7 + $0x80] sm:$0xf]
  %v1012 = vld [vmem:[%s7 + $0x84] sm:$0xf]
  %v1013 = vld [vmem:[%s7 + $0x88] sm:$0xf]
  %v1014 = vld [vmem:[%s7 + $0x8c] sm:$0xf]
  %v1015 = vld [vmem:[%s7 + $0x90] sm:$0xf]
  %v1016 = vld [vmem:[%s7 + $0x94] sm:$0xf]
  %v1017 = vld [vmem:[%s7 + $0x98] sm:$0xf]
  %v1018 = vld [vmem:[%s7 + $0x9c] sm:$0xf]
  %v1019 = vld [vmem:[%s7 + $0xa0] sm:$0xf]
  %v1020 = vld [vmem:[%s7 + $0xa4] sm:$0xf]
  %v1021 = vld [vmem:[%s7 + $0xa8] sm:$0xf]
  %v1022 = vld [vmem:[%s7 + $0xac] sm:$0xf]
  %v1023 = vld [vmem:[%s7 + $0xb0] sm:$0xf]
  %v1024 = vld [vmem:[%s7 + $0xb4] sm:$0xf]
  %v1025 = vld [vmem:[%s7 + $0xb8] sm:$0xf]
  %v1026 = vld [vmem:[%s7 + $0xbc] sm:$0xf]
  %v1027 = vld [vmem:[%s7 + $0xc0] sm:$0xf]
  %v1028 = vld [vmem:[%s7 + $0xc4] sm:$0xf]
  %v1029 = vld [vmem:[%s7 + $0xc8] sm:$0xf]
  %v1030 = vld [vmem:[%s7 + $0xcc] sm:$0xf]
  %v1031 = vld [vmem:[%s7 + $0xd0] sm:$0xf]
  %v1032 = vld [vmem:[%s7 + $0xd4] sm:$0xf]
  %v1033 = vld [vmem:[%s7 + $0xd8] sm:$0xf]
  %v1034 = vld [vmem:[%s7 + $0xdc] sm:$0xf]
  %v1035 = vld [vmem:[%s7 + $0xe0] sm:$0xf]
  %v1036 = vld [vmem:[%s7 + $0xe4] sm:$0xf]
  %v1037 = vld [vmem:[%s7 + $0xe8] sm:$0xf]
  %v1038 = vld [vmem:[%s7 + $0xec] sm:$0xf]
  %v1039 = vld [vmem:[%s7 + $0xf0] sm:$0xf]
  %v1040 = vld [vmem:[%s7 + $0xf4] sm:$0xf]
  %v1041 = vld [vmem:[%s7 + $0xf8] sm:$0xf]
  %v1042 = vld [vmem:[%s7 + $0xfc] sm:$0xf]
  %v1043 = vld [vmem:[%s7 + $0x100] sm:$0xf]
  %v1044 = vld [vmem:[%s7 + $0x104] sm:$0xf]
  %v1045 = vld [vmem:[%s7 + $0x108] sm:$0xf]
  %v1046 = vld [vmem:[%s7 + $0x10c] sm:$0xf]
  %v1047 = vld [vmem:[%s7 + $0x110] sm:$0xf]
  %v1048 = vld [vmem:[%s7 + $0x114] sm:$0xf]
  %v1049 = vld [vmem:[%s7 + $0x118] sm:$0xf]
  %v1050 = vld [vmem:[%s7 + $0x11c] sm:$0xf]
  %v1051 = vld [vmem:[%s7 + $0x120] sm:$0xf]
  %v1052 = vld [vmem:[%s7 + $0x124] sm:$0xf]
  %v1053 = vld [vmem:[%s7 + $0x128] sm:$0xf]
  %v1054 = vld [vmem:[%s7 + $0x12c] sm:$0xf]
  %v1055 = vld [vmem:[%s7 + $0x130] sm:$0xf]
  %v1056 = vld [vmem:[%s7 + $0x134] sm:$0xf]
  %v1057 = vld [vmem:[%s7 + $0x138] sm:$0xf]
  %v1058 = vld [vmem:[%s7 + $0x13c] sm:$0xf]
  %v1059 = vld [vmem:[%s7 + $0x140] sm:$0xf]
  %v1060 = vld [vmem:[%s7 + $0x144] sm:$0xf]
  %v1061 = vld [vmem:[%s7 + $0x148] sm:$0xf]
  %v1062 = vld [vmem:[%s7 + $0x14c] sm:$0xf]
  %v1063 = vld [vmem:[%s7 + $0x150] sm:$0xf]
  %v1064 = vld [vmem:[%s7 + $0x154] sm:$0xf]
  %v1065 = vld [vmem:[%s7 + $0x158] sm:$0xf]
  %v1066 = vld [vmem:[%s7 + $0x15c] sm:$0xf]
  %v1067 = vld [vmem:[%s7 + $0x160] sm:$0xf]
  %v1068 = vld [vmem:[%s7 + $0x164] sm:$0xf]
  %v1069 = vld [vmem:[%s7 + $0x168] sm:$0xf]
  %v1070 = vld [vmem:[%s7 + $0x16c] sm:$0xf]
  %v1071 = vld [vmem:[%s7 + $0x170] sm:$0xf]
  %v1072 = vld [vmem:[%s7 + $0x174] sm:$0xf]
  %v1073 = vld [vmem:[%s7 + $0x178] sm:$0xf]
  %v1074 = vld [vmem:[%s7 + $0x17c] sm:$0xf]
  %v1075 = vld [vmem:[%s7 + $0x180] sm:$0xf]
  %v1076 = vld [vmem:[%s7 + $0x184] sm:$0xf]
  %v1077 = vld [vmem:[%s7 + $0x188] sm:$0xf]
  %v1078 = vld [vmem:[%s7 + $0x18c] sm:$0xf]
  %v1079 = vld [vmem:[%s7 + $0x190] sm:$0xf]
  %v1080 = vld [vmem:[%s7 + $0x194] sm:$0xf]
  %v1081 = vld [vmem:[%s7 + $0x198] sm:$0xf]
  %v1082 = vld [vmem:[%s7 + $0x19c] sm:$0xf]
  %v1083 = vld [vmem:[%s7 + $0x1a0] sm:$0xf]
  %v1084 = vld [vmem:[%s7 + $0x1a4] sm:$0xf]
  %v1085 = vld [vmem:[%s7 + $0x1a8] sm:$0xf]
  %v1086 = vld [vmem:[%s7 + $0x1ac] sm:$0xf]
  %v1087 = vld [vmem:[%s7 + $0x1b0] sm:$0xf]
  %v1088 = vld [vmem:[%s7 + $0x1b4] sm:$0xf]
  %v1089 = vld [vmem:[%s7 + $0x1b8] sm:$0xf]
  %v1090 = vld [vmem:[%s7 + $0x1bc] sm:$0xf]
  %v1091 = vld [vmem:[%s7 + $0x1c0] sm:$0xf]
  %v1092 = vld [vmem:[%s7 + $0x1c4] sm:$0xf]
  %v1093 = vld [vmem:[%s7 + $0x1c8] sm:$0xf]
  %v1094 = vld [vmem:[%s7 + $0x1cc] sm:$0xf]
  %v1095 = vld [vmem:[%s7 + $0x1d0] sm:$0xf]
  %v1096 = vld [vmem:[%s7 + $0x1d4] sm:$0xf]
  %v1097 = vld [vmem:[%s7 + $0x1d8] sm:$0xf]
  %v1098 = vld [vmem:[%s7 + $0x1dc] sm:$0xf]
  %v1099 = vld [vmem:[%s7 + $0x1e0] sm:$0xf]
  %v1100 = vld [vmem:[%s7 + $0x1e4] sm:$0xf]
  %v1101 = vld [vmem:[%s7 + $0x1e8] sm:$0xf]
  %v1102 = vld [vmem:[%s7 + $0x1ec] sm:$0xf]
  %v1103 = vld [vmem:[%s7 + $0x1f0] sm:$0xf]
  %v1104 = vld [vmem:[%s7 + $0x1f4] sm:$0xf]
  %v1105 = vld [vmem:[%s7 + $0x1f8] sm:$0xf]
  %v1106 = vld [vmem:[%s7 + $0x1fc] sm:$0xf]
  %v1107 = vld [vmem:[%s7 + $0x200] sm:$0xf]
  %v1108 = vld [vmem:[%s7 + $0x204] sm:$0xf]
  %v1109 = vld [vmem:[%s7 + $0x208] sm:$0xf]
  %v1110 = vld [vmem:[%s7 + $0x20c] sm:$0xf]
  %v1111 = vld [vmem:[%s7 + $0x210] sm:$0xf]
  %v1112 = vld [vmem:[%s7 + $0x214] sm:$0xf]
  %v1113 = vld [vmem:[%s7 + $0x218] sm:$0xf]
  %v1114 = vld [vmem:[%s7 + $0x21c] sm:$0xf]
  %v1115 = vld [vmem:[%s7 + $0x220] sm:$0xf]
  %v1116 = vld [vmem:[%s7 + $0x224] sm:$0xf]
  %v1117 = vld [vmem:[%s7 + $0x228] sm:$0xf]
  %v1118 = vld [vmem:[%s7 + $0x22c] sm:$0xf]
  %v1119 = vld [vmem:[%s7 + $0x230] sm:$0xf]
  %v1120 = vld [vmem:[%s7 + $0x234] sm:$0xf]
  %v1121 = vld [vmem:[%s7 + $0x238] sm:$0xf]
  %v1122 = vld [vmem:[%s7 + $0x23c] sm:$0xf]
  %v1123 = vld [vmem:[%s7 + $0x240] sm:$0xf]
  %v1124 = vld [vmem:[%s7 + $0x244] sm:$0xf]
  %v1125 = vld [vmem:[%s7 + $0x248] sm:$0xf]
  %v1126 = vld [vmem:[%s7 + $0x24c] sm:$0xf]
  %v1127 = vld [vmem:[%s7 + $0x250] sm:$0xf]
  %v1128 = vld [vmem:[%s7 + $0x254] sm:$0xf]
  %v1129 = vld [vmem:[%s7 + $0x258] sm:$0xf]
  %v1130 = vld [vmem:[%s7 + $0x25c] sm:$0xf]
  %v1131 = vld [vmem:[%s7 + $0x260] sm:$0xf]
  %v1132 = vld [vmem:[%s7 + $0x264] sm:$0xf]
  %v1133 = vld [vmem:[%s7 + $0x268] sm:$0xf]
  %v1134 = vld [vmem:[%s7 + $0x26c] sm:$0xf]
  %v1135 = vld [vmem:[%s7 + $0x270] sm:$0xf]
  %v1136 = vld [vmem:[%s7 + $0x274] sm:$0xf]
  %v1137 = vld [vmem:[%s7 + $0x278] sm:$0xf]
  %v1138 = vld [vmem:[%s7 + $0x27c] sm:$0xf]
  %v1139 = vld [vmem:[%s7 + $0x280] sm:$0xf]
  %v1140 = vld [vmem:[%s7 + $0x284] sm:$0xf]
  %v1141 = vld [vmem:[%s7 + $0x288] sm:$0xf]
  %v1142 = vld [vmem:[%s7 + $0x28c] sm:$0xf]
  %v1143 = vld [vmem:[%s7 + $0x290] sm:$0xf]
  %v1144 = vld [vmem:[%s7 + $0x294] sm:$0xf]
  %v1145 = vld [vmem:[%s7 + $0x298] sm:$0xf]
  %v1146 = vld [vmem:[%s7 + $0x29c] sm:$0xf]
  %v1147 = vld [vmem:[%s7 + $0x2a0] sm:$0xf]
  %v1148 = vld [vmem:[%s7 + $0x2a4] sm:$0xf]
  %v1149 = vld [vmem:[%s7 + $0x2a8] sm:$0xf]
  %v1150 = vld [vmem:[%s7 + $0x2ac] sm:$0xf]
  %v1151 = vld [vmem:[%s7 + $0x2b0] sm:$0xf]
  %v1152 = vld [vmem:[%s7 + $0x2b4] sm:$0xf]
  %v1153 = vld [vmem:[%s7 + $0x2b8] sm:$0xf]
  %v1154 = vld [vmem:[%s7 + $0x2bc] sm:$0xf]
  %v1155 = vld [vmem:[%s7 + $0x2c0] sm:$0xf]
  %v1156 = vld [vmem:[%s7 + $0x2c4] sm:$0xf]
  %v1157 = vld [vmem:[%s7 + $0x2c8] sm:$0xf]
  %v1158 = vld [vmem:[%s7 + $0x2cc] sm:$0xf]
  %v1159 = vld [vmem:[%s7 + $0x2d0] sm:$0xf]
  %v1160 = vld [vmem:[%s7 + $0x2d4] sm:$0xf]
  %v1161 = vld [vmem:[%s7 + $0x2d8] sm:$0xf]
  %v1162 = vld [vmem:[%s7 + $0x2dc] sm:$0xf]
  %v1163 = vld [vmem:[%s7 + $0x2e0] sm:$0xf]
  %v1164 = vld [vmem:[%s7 + $0x2e4] sm:$0xf]
  %v1165 = vld [vmem:[%s7 + $0x2e8] sm:$0xf]
  %v1166 = vld [vmem:[%s7 + $0x2ec] sm:$0xf]
  %v1167 = vld [vmem:[%s7 + $0x2f0] sm:$0xf]
  %v1168 = vld [vmem:[%s7 + $0x2f4] sm:$0xf]
  %v1169 = vld [vmem:[%s7 + $0x2f8] sm:$0xf]
  %v1170 = vld [vmem:[%s7 + $0x2fc] sm:$0xf]
  %v1171 = vld [vmem:[%s7 + $0x300] sm:$0xf]
  %v1172 = vld [vmem:[%s7 + $0x304] sm:$0xf]
  %v1173 = vld [vmem:[%s7 + $0x308] sm:$0xf]
  %v1174 = vld [vmem:[%s7 + $0x30c] sm:$0xf]
  %v1175 = vld [vmem:[%s7 + $0x310] sm:$0xf]
  %v1176 = vld [vmem:[%s7 + $0x314] sm:$0xf]
  %v1177 = vld [vmem:[%s7 + $0x318] sm:$0xf]
  %v1178 = vld [vmem:[%s7 + $0x31c] sm:$0xf]
  %v1179 = vld [vmem:[%s7 + $0x320] sm:$0xf]
  %v1180 = vld [vmem:[%s7 + $0x324] sm:$0xf]
  %v1181 = vld [vmem:[%s7 + $0x328] sm:$0xf]
  %v1182 = vld [vmem:[%s7 + $0x32c] sm:$0xf]
  %v1183 = vld [vmem:[%s7 + $0x330] sm:$0xf]
  %v1184 = vld [vmem:[%s7 + $0x334] sm:$0xf]
  %v1185 = vld [vmem:[%s7 + $0x338] sm:$0xf]
  %v1186 = vld [vmem:[%s7 + $0x33c] sm:$0xf]
  %v1187 = vld [vmem:[%s7 + $0x340] sm:$0xf]
  %v1188 = vld [vmem:[%s7 + $0x344] sm:$0xf]
  %v1189 = vld [vmem:[%s7 + $0x348] sm:$0xf]
  %v1190 = vld [vmem:[%s7 + $0x34c] sm:$0xf]
  %v1191 = vld [vmem:[%s7 + $0x350] sm:$0xf]
  %v1192 = vld [vmem:[%s7 + $0x354] sm:$0xf]
  %v1193 = vld [vmem:[%s7 + $0x358] sm:$0xf]
  %v1194 = vld [vmem:[%s7 + $0x35c] sm:$0xf]
  %v1195 = vld [vmem:[%s7 + $0x360] sm:$0xf]
  %v1196 = vld [vmem:[%s7 + $0x364] sm:$0xf]
  %v1197 = vld [vmem:[%s7 + $0x368] sm:$0xf]
  %v1198 = vld [vmem:[%s7 + $0x36c] sm:$0xf]
  %v1199 = vld [vmem:[%s7 + $0x370] sm:$0xf]
  %v1200 = vld [vmem:[%s7 + $0x374] sm:$0xf]
  %v1201 = vld [vmem:[%s7 + $0x378] sm:$0xf]
  %v1202 = vld [vmem:[%s7 + $0x37c] sm:$0xf]
  %v1203 = vld [vmem:[%s7 + $0x380] sm:$0xf]
  %v1204 = vld [vmem:[%s7 + $0x384] sm:$0xf]
  %v1205 = vld [vmem:[%s7 + $0x388] sm:$0xf]
  %v1206 = vld [vmem:[%s7 + $0x38c] sm:$0xf]
  %v1207 = vld [vmem:[%s7 + $0x390] sm:$0xf]
  %v1208 = vld [vmem:[%s7 + $0x394] sm:$0xf]
  %v1209 = vld [vmem:[%s7 + $0x398] sm:$0xf]
  %v1210 = vld [vmem:[%s7 + $0x39c] sm:$0xf]
  %v1211 = vld [vmem:[%s7 + $0x3a0] sm:$0xf]
  %v1212 = vld [vmem:[%s7 + $0x3a4] sm:$0xf]
  %v1213 = vld [vmem:[%s7 + $0x3a8] sm:$0xf]
  %v1214 = vld [vmem:[%s7 + $0x3ac] sm:$0xf]
  %v1215 = vld [vmem:[%s7 + $0x3b0] sm:$0xf]
  %v1216 = vld [vmem:[%s7 + $0x3b4] sm:$0xf]
  %v1217 = vld [vmem:[%s7 + $0x3b8] sm:$0xf]
  %v1218 = vld [vmem:[%s7 + $0x3bc] sm:$0xf]
  %v1219 = vld [vmem:[%s7 + $0x3c0] sm:$0xf]
  %v1220 = vld [vmem:[%s7 + $0x3c4] sm:$0xf]
  %v1221 = vld [vmem:[%s7 + $0x3c8] sm:$0xf]
  %v1222 = vld [vmem:[%s7 + $0x3cc] sm:$0xf]
  %v1223 = vld [vmem:[%s7 + $0x3d0] sm:$0xf]
  %v1224 = vld [vmem:[%s7 + $0x3d4] sm:$0xf]
  %v1225 = vld [vmem:[%s7 + $0x3d8] sm:$0xf]
  %v1226 = vld [vmem:[%s7 + $0x3dc] sm:$0xf]
  %v1227 = vld [vmem:[%s7 + $0x3e0] sm:$0xf]
  %v1228 = vld [vmem:[%s7 + $0x3e4] sm:$0xf]
  %v1229 = vld [vmem:[%s7 + $0x3e8] sm:$0xf]
  %v1230 = vld [vmem:[%s7 + $0x3ec] sm:$0xf]
  %v1231 = vld [vmem:[%s7 + $0x3f0] sm:$0xf]
  %v1232 = vld [vmem:[%s7 + $0x3f4] sm:$0xf]
  %v1233 = vld [vmem:[%s7 + $0x3f8] sm:$0xf]
  %v1234 = vld [vmem:[%s7 + $0x3fc] sm:$0xf]
  %v1235 = vld [vmem:[%s8] sm:$0xff]
  %v1236 = vld [vmem:[%s8 + $0x8] sm:$0xff]
  %v1237 = vld [vmem:[%s8 + $0x10] sm:$0xff]
  %v1238 = vld [vmem:[%s8 + $0x18] sm:$0xff]
  %vm1239 = vcmask 261120
  %v1241 = vsel %vm1239, %v870, 0
  %1243 = vmatprep.subr.mxu0 0.0
  %1244 = vmatpush1.msra.mxu0 %v1235
  %1245 = vmatprep.subr.mxu0 0.0
  %1246 = vmatpush1.msra.mxu0 %v1236
  %1247 = vmatprep.subr.mxu0 0.0
  %1248 = vmatpush1.msra.mxu0 %v1237
  %1249 = vmatprep.subr.mxu0 0.0
  %1250 = vmatpush1.msra.mxu0 %v1238
  %1251 = vmatprep.subr.mxu0 0.0
  %1252 = vmatpush1.msra.mxu0 0.0
  %1253 = vmatprep.subr.mxu0 0.0
  %1254 = vmatpush1.msra.mxu0 0.0
  %1255 = vmatprep.subr.mxu0 0.0
  %1256 = vmatpush1.msra.mxu0 0.0
  %1257 = vmatprep.subr.mxu0 0.0
  %1258 = vmatpush1.msra.mxu0 0.0
  %1259 = vmatprep.subr.mxu0 0.0
  %1260 = vmatpush1.msra.mxu0 0.0
  %1261 = vmatprep.subr.mxu0 0.0
  %1262 = vmatpush1.msra.mxu0 0.0
  %1263 = vmatprep.subr.mxu0 0.0
  %1264 = vmatpush1.msra.mxu0 0.0
  %1265 = vmatprep.subr.mxu0 0.0
  %1266 = vmatpush1.msra.mxu0 0.0
  %1267 = vmatprep.subr.mxu0 0.0
  %1268 = vmatpush1.msra.mxu0 0.0
  %1269 = vmatprep.subr.mxu0 0.0
  %1270 = vmatpush1.msra.mxu0 0.0
  %1271 = vmatprep.subr.mxu0 0.0
  %1272 = vmatpush1.msra.mxu0 0.0
  %1273 = vmatprep.subr.mxu0 0.0
  %1274 = vmatpush1.msra.mxu0 0.0
  %1275 = vmatprep.subr.mxu0 0.0
  %1276 = vmatpush1.msra.mxu0 0.0
  %1277 = vmatprep.subr.mxu0 0.0
  %1278 = vmatpush1.msra.mxu0 0.0
  %1279 = vmatprep.subr.mxu0 0.0
  %1280 = vmatpush1.msra.mxu0 0.0
  %1281 = vmatprep.subr.mxu0 0.0
  %1282 = vmatpush1.msra.mxu0 0.0
  %1283 = vmatprep.subr.mxu0 0.0
  %1284 = vmatpush1.msra.mxu0 0.0
  %1285 = vmatprep.subr.mxu0 0.0
  %1286 = vmatpush1.msra.mxu0 0.0
  %1287 = vmatprep.subr.mxu0 0.0
  %1288 = vmatpush1.msra.mxu0 0.0
  %1289 = vmatprep.subr.mxu0 0.0
  %1290 = vmatpush1.msra.mxu0 0.0
  %1291 = vmatprep.subr.mxu0 0.0
  %1292 = vmatpush1.msra.mxu0 0.0
  %1293 = vmatprep.subr.mxu0 0.0
  %1294 = vmatpush1.msra.mxu0 0.0
  %1295 = vmatprep.subr.mxu0 0.0
  %1296 = vmatpush1.msra.mxu0 0.0
  %1297 = vmatprep.subr.mxu0 0.0
  %1298 = vmatpush1.msra.mxu0 0.0
  %1299 = vmatprep.subr.mxu0 0.0
  %1300 = vmatpush1.msra.mxu0 0.0
  %1301 = vmatprep.subr.mxu0 0.0
  %1302 = vmatpush1.msra.mxu0 0.0
  %1303 = vmatprep.subr.mxu0 0.0
  %1304 = vmatpush1.msra.mxu0 0.0
  %1305 = vmatprep.subr.mxu0 0.0
  %1306 = vmatpush1.msra.mxu0 0.0
  %1307 = vmatprep.mubr.f32.mxu0 0.0
  %1308 = vmatmul.mubr.f32.gmra.mrb[0].mxu0 %v1241
  %v1309 = vpop.f32.mrb[0].mxu0
  %v1310 = vadd.f32 0.0, %v1309
  %v1311 = vpop.f32.mrb[0].mxu0
  %1312 = vdwg.mxu0
  %v1569 = vunpack.c.l.b16 %v979
  %v1570 = vunpack.c.l.b16 %v980
  %v1571 = vunpack.c.l.b16 %v981
  %v1572 = vunpack.c.l.b16 %v982
  %v1573 = vunpack.c.l.b16 %v983
  %v1574 = vunpack.c.l.b16 %v984
  %v1575 = vunpack.c.l.b16 %v985
  %v1576 = vunpack.c.l.b16 %v986
  %v1577 = vunpack.c.l.b16 %v987
  %v1578 = vunpack.c.l.b16 %v988
  %v1579 = vunpack.c.l.b16 %v989
  %v1580 = vunpack.c.l.b16 %v990
  %v1581 = vunpack.c.l.b16 %v991
  %v1582 = vunpack.c.l.b16 %v992
  %v1583 = vunpack.c.l.b16 %v993
  %v1584 = vunpack.c.l.b16 %v994
  %v1585 = vunpack.c.l.b16 %v995
  %v1586 = vunpack.c.l.b16 %v996
  %v1587 = vunpack.c.l.b16 %v997
  %v1588 = vunpack.c.l.b16 %v998
  %v1589 = vunpack.c.l.b16 %v999
  %v1590 = vunpack.c.l.b16 %v1000
  %v1591 = vunpack.c.l.b16 %v1001
  %v1592 = vunpack.c.l.b16 %v1002
  %v1593 = vunpack.c.l.b16 %v1003
  %v1594 = vunpack.c.l.b16 %v1004
  %v1595 = vunpack.c.l.b16 %v1005
  %v1596 = vunpack.c.l.b16 %v1006
  %v1597 = vunpack.c.l.b16 %v1007
  %v1598 = vunpack.c.l.b16 %v1008
  %v1599 = vunpack.c.l.b16 %v1009
  %v1600 = vunpack.c.l.b16 %v1010
  %v1601 = vunpack.c.l.b16 %v1011
  %v1602 = vunpack.c.l.b16 %v1012
  %v1603 = vunpack.c.l.b16 %v1013
  %v1604 = vunpack.c.l.b16 %v1014
  %v1605 = vunpack.c.l.b16 %v1015
  %v1606 = vunpack.c.l.b16 %v1016
  %v1607 = vunpack.c.l.b16 %v1017
  %v1608 = vunpack.c.l.b16 %v1018
  %v1609 = vunpack.c.l.b16 %v1019
  %v1610 = vunpack.c.l.b16 %v1020
  %v1611 = vunpack.c.l.b16 %v1021
  %v1612 = vunpack.c.l.b16 %v1022
  %v1613 = vunpack.c.l.b16 %v1023
  %v1614 = vunpack.c.l.b16 %v1024
  %v1615 = vunpack.c.l.b16 %v1025
  %v1616 = vunpack.c.l.b16 %v1026
  %v1617 = vunpack.c.l.b16 %v1027
  %v1618 = vunpack.c.l.b16 %v1028
  %v1619 = vunpack.c.l.b16 %v1029
  %v1620 = vunpack.c.l.b16 %v1030
  %v1621 = vunpack.c.l.b16 %v1031
  %v1622 = vunpack.c.l.b16 %v1032
  %v1623 = vunpack.c.l.b16 %v1033
  %v1624 = vunpack.c.l.b16 %v1034
  %v1625 = vunpack.c.l.b16 %v1035
  %v1626 = vunpack.c.l.b16 %v1036
  %v1627 = vunpack.c.l.b16 %v1037
  %v1628 = vunpack.c.l.b16 %v1038
  %v1629 = vunpack.c.l.b16 %v1039
  %v1630 = vunpack.c.l.b16 %v1040
  %v1631 = vunpack.c.l.b16 %v1041
  %v1632 = vunpack.c.l.b16 %v1042
  %v1633 = vunpack.c.l.b16 %v1043
  %v1634 = vunpack.c.l.b16 %v1044
  %v1635 = vunpack.c.l.b16 %v1045
  %v1636 = vunpack.c.l.b16 %v1046
  %v1637 = vunpack.c.l.b16 %v1047
  %v1638 = vunpack.c.l.b16 %v1048
  %v1639 = vunpack.c.l.b16 %v1049
  %v1640 = vunpack.c.l.b16 %v1050
  %v1641 = vunpack.c.l.b16 %v1051
  %v1642 = vunpack.c.l.b16 %v1052
  %v1643 = vunpack.c.l.b16 %v1053
  %v1644 = vunpack.c.l.b16 %v1054
  %v1645 = vunpack.c.l.b16 %v1055
  %v1646 = vunpack.c.l.b16 %v1056
  %v1647 = vunpack.c.l.b16 %v1057
  %v1648 = vunpack.c.l.b16 %v1058
  %v1649 = vunpack.c.l.b16 %v1059
  %v1650 = vunpack.c.l.b16 %v1060
  %v1651 = vunpack.c.l.b16 %v1061
  %v1652 = vunpack.c.l.b16 %v1062
  %v1653 = vunpack.c.l.b16 %v1063
  %v1654 = vunpack.c.l.b16 %v1064
  %v1655 = vunpack.c.l.b16 %v1065
  %v1656 = vunpack.c.l.b16 %v1066
  %v1657 = vunpack.c.l.b16 %v1067
  %v1658 = vunpack.c.l.b16 %v1068
  %v1659 = vunpack.c.l.b16 %v1069
  %v1660 = vunpack.c.l.b16 %v1070
  %v1661 = vunpack.c.l.b16 %v1071
  %v1662 = vunpack.c.l.b16 %v1072
  %v1663 = vunpack.c.l.b16 %v1073
  %v1664 = vunpack.c.l.b16 %v1074
  %v1665 = vunpack.c.l.b16 %v1075
  %v1666 = vunpack.c.l.b16 %v1076
  %v1667 = vunpack.c.l.b16 %v1077
  %v1668 = vunpack.c.l.b16 %v1078
  %v1669 = vunpack.c.l.b16 %v1079
  %v1670 = vunpack.c.l.b16 %v1080
  %v1671 = vunpack.c.l.b16 %v1081
  %v1672 = vunpack.c.l.b16 %v1082
  %v1673 = vunpack.c.l.b16 %v1083
  %v1674 = vunpack.c.l.b16 %v1084
  %v1675 = vunpack.c.l.b16 %v1085
  %v1676 = vunpack.c.l.b16 %v1086
  %v1677 = vunpack.c.l.b16 %v1087
  %v1678 = vunpack.c.l.b16 %v1088
  %v1679 = vunpack.c.l.b16 %v1089
  %v1680 = vunpack.c.l.b16 %v1090
  %v1681 = vunpack.c.l.b16 %v1091
  %v1682 = vunpack.c.l.b16 %v1092
  %v1683 = vunpack.c.l.b16 %v1093
  %v1684 = vunpack.c.l.b16 %v1094
  %v1685 = vunpack.c.l.b16 %v1095
  %v1686 = vunpack.c.l.b16 %v1096
  %v1687 = vunpack.c.l.b16 %v1097
  %v1688 = vunpack.c.l.b16 %v1098
  %v1689 = vunpack.c.l.b16 %v1099
  %v1690 = vunpack.c.l.b16 %v1100
  %v1691 = vunpack.c.l.b16 %v1101
  %v1692 = vunpack.c.l.b16 %v1102
  %v1693 = vunpack.c.l.b16 %v1103
  %v1694 = vunpack.c.l.b16 %v1104
  %v1695 = vunpack.c.l.b16 %v1105
  %v1696 = vunpack.c.l.b16 %v1106
  %v1697 = vunpack.c.l.b16 %v1107
  %v1698 = vunpack.c.l.b16 %v1108
  %v1699 = vunpack.c.l.b16 %v1109
  %v1700 = vunpack.c.l.b16 %v1110
  %v1701 = vunpack.c.l.b16 %v1111
  %v1702 = vunpack.c.l.b16 %v1112
  %v1703 = vunpack.c.l.b16 %v1113
  %v1704 = vunpack.c.l.b16 %v1114
  %v1705 = vunpack.c.l.b16 %v1115
  %v1706 = vunpack.c.l.b16 %v1116
  %v1707 = vunpack.c.l.b16 %v1117
  %v1708 = vunpack.c.l.b16 %v1118
  %v1709 = vunpack.c.l.b16 %v1119
  %v1710 = vunpack.c.l.b16 %v1120
  %v1711 = vunpack.c.l.b16 %v1121
  %v1712 = vunpack.c.l.b16 %v1122
  %v1713 = vunpack.c.l.b16 %v1123
  %v1714 = vunpack.c.l.b16 %v1124
  %v1715 = vunpack.c.l.b16 %v1125
  %v1716 = vunpack.c.l.b16 %v1126
  %v1717 = vunpack.c.l.b16 %v1127
  %v1718 = vunpack.c.l.b16 %v1128
  %v1719 = vunpack.c.l.b16 %v1129
  %v1720 = vunpack.c.l.b16 %v1130
  %v1721 = vunpack.c.l.b16 %v1131
  %v1722 = vunpack.c.l.b16 %v1132
  %v1723 = vunpack.c.l.b16 %v1133
  %v1724 = vunpack.c.l.b16 %v1134
  %v1725 = vunpack.c.l.b16 %v1135
  %v1726 = vunpack.c.l.b16 %v1136
  %v1727 = vunpack.c.l.b16 %v1137
  %v1728 = vunpack.c.l.b16 %v1138
  %v1729 = vunpack.c.l.b16 %v1139
  %v1730 = vunpack.c.l.b16 %v1140
  %v1731 = vunpack.c.l.b16 %v1141
  %v1732 = vunpack.c.l.b16 %v1142
  %v1733 = vunpack.c.l.b16 %v1143
  %v1734 = vunpack.c.l.b16 %v1144
  %v1735 = vunpack.c.l.b16 %v1145
  %v1736 = vunpack.c.l.b16 %v1146
  %v1737 = vunpack.c.l.b16 %v1147
  %v1738 = vunpack.c.l.b16 %v1148
  %v1739 = vunpack.c.l.b16 %v1149
  %v1740 = vunpack.c.l.b16 %v1150
  %v1741 = vunpack.c.l.b16 %v1151
  %v1742 = vunpack.c.l.b16 %v1152
  %v1743 = vunpack.c.l.b16 %v1153
  %v1744 = vunpack.c.l.b16 %v1154
  %v1745 = vunpack.c.l.b16 %v1155
  %v1746 = vunpack.c.l.b16 %v1156
  %v1747 = vunpack.c.l.b16 %v1157
  %v1748 = vunpack.c.l.b16 %v1158
  %v1749 = vunpack.c.l.b16 %v1159
  %v1750 = vunpack.c.l.b16 %v1160
  %v1751 = vunpack.c.l.b16 %v1161
  %v1752 = vunpack.c.l.b16 %v1162
  %v1753 = vunpack.c.l.b16 %v1163
  %v1754 = vunpack.c.l.b16 %v1164
  %v1755 = vunpack.c.l.b16 %v1165
  %v1756 = vunpack.c.l.b16 %v1166
  %v1757 = vunpack.c.l.b16 %v1167
  %v1758 = vunpack.c.l.b16 %v1168
  %v1759 = vunpack.c.l.b16 %v1169
  %v1760 = vunpack.c.l.b16 %v1170
  %v1761 = vunpack.c.l.b16 %v1171
  %v1762 = vunpack.c.l.b16 %v1172
  %v1763 = vunpack.c.l.b16 %v1173
  %v1764 = vunpack.c.l.b16 %v1174
  %v1765 = vunpack.c.l.b16 %v1175
  %v1766 = vunpack.c.l.b16 %v1176
  %v1767 = vunpack.c.l.b16 %v1177
  %v1768 = vunpack.c.l.b16 %v1178
  %v1769 = vunpack.c.l.b16 %v1179
  %v1770 = vunpack.c.l.b16 %v1180
  %v1771 = vunpack.c.l.b16 %v1181
  %v1772 = vunpack.c.l.b16 %v1182
  %v1773 = vunpack.c.l.b16 %v1183
  %v1774 = vunpack.c.l.b16 %v1184
  %v1775 = vunpack.c.l.b16 %v1185
  %v1776 = vunpack.c.l.b16 %v1186
  %v1777 = vunpack.c.l.b16 %v1187
  %v1778 = vunpack.c.l.b16 %v1188
  %v1779 = vunpack.c.l.b16 %v1189
  %v1780 = vunpack.c.l.b16 %v1190
  %v1781 = vunpack.c.l.b16 %v1191
  %v1782 = vunpack.c.l.b16 %v1192
  %v1783 = vunpack.c.l.b16 %v1193
  %v1784 = vunpack.c.l.b16 %v1194
  %v1785 = vunpack.c.l.b16 %v1195
  %v1786 = vunpack.c.l.b16 %v1196
  %v1787 = vunpack.c.l.b16 %v1197
  %v1788 = vunpack.c.l.b16 %v1198
  %v1789 = vunpack.c.l.b16 %v1199
  %v1790 = vunpack.c.l.b16 %v1200
  %v1791 = vunpack.c.l.b16 %v1201
  %v1792 = vunpack.c.l.b16 %v1202
  %v1793 = vunpack.c.l.b16 %v1203
  %v1794 = vunpack.c.l.b16 %v1204
  %v1795 = vunpack.c.l.b16 %v1205
  %v1796 = vunpack.c.l.b16 %v1206
  %v1797 = vunpack.c.l.b16 %v1207
  %v1798 = vunpack.c.l.b16 %v1208
  %v1799 = vunpack.c.l.b16 %v1209
  %v1800 = vunpack.c.l.b16 %v1210
  %v1801 = vunpack.c.l.b16 %v1211
  %v1802 = vunpack.c.l.b16 %v1212
  %v1803 = vunpack.c.l.b16 %v1213
  %v1804 = vunpack.c.l.b16 %v1214
  %v1805 = vunpack.c.l.b16 %v1215
  %v1806 = vunpack.c.l.b16 %v1216
  %v1807 = vunpack.c.l.b16 %v1217
  %v1808 = vunpack.c.l.b16 %v1218
  %v1809 = vunpack.c.l.b16 %v1219
  %v1810 = vunpack.c.l.b16 %v1220
  %v1811 = vunpack.c.l.b16 %v1221
  %v1812 = vunpack.c.l.b16 %v1222
  %v1813 = vunpack.c.l.b16 %v1223
  %v1814 = vunpack.c.l.b16 %v1224
  %v1815 = vunpack.c.l.b16 %v1225
  %v1816 = vunpack.c.l.b16 %v1226
  %v1817 = vunpack.c.l.b16 %v1227
  %v1818 = vunpack.c.l.b16 %v1228
  %v1819 = vunpack.c.l.b16 %v1229
  %v1820 = vunpack.c.l.b16 %v1230
  %v1821 = vunpack.c.l.b16 %v1231
  %v1822 = vunpack.c.l.b16 %v1232
  %v1823 = vunpack.c.l.b16 %v1233
  %v1824 = vunpack.c.l.b16 %v1234
  %v1825 = vpack.c.b16 %v1570, %v1569
  %v1826 = vpack.c.b16 %v1572, %v1571
  %v1827 = vpack.c.b16 %v1574, %v1573
  %v1828 = vpack.c.b16 %v1576, %v1575
  %v1829 = vpack.c.b16 %v1578, %v1577
  %v1830 = vpack.c.b16 %v1580, %v1579
  %v1831 = vpack.c.b16 %v1582, %v1581
  %v1832 = vpack.c.b16 %v1584, %v1583
  %v1833 = vpack.c.b16 %v1586, %v1585
  %v1834 = vpack.c.b16 %v1588, %v1587
  %v1835 = vpack.c.b16 %v1590, %v1589
  %v1836 = vpack.c.b16 %v1592, %v1591
  %v1837 = vpack.c.b16 %v1594, %v1593
  %v1838 = vpack.c.b16 %v1596, %v1595
  %v1839 = vpack.c.b16 %v1598, %v1597
  %v1840 = vpack.c.b16 %v1600, %v1599
  %v1841 = vpack.c.b16 %v1602, %v1601
  %v1842 = vpack.c.b16 %v1604, %v1603
  %v1843 = vpack.c.b16 %v1606, %v1605
  %v1844 = vpack.c.b16 %v1608, %v1607
  %v1845 = vpack.c.b16 %v1610, %v1609
  %v1846 = vpack.c.b16 %v1612, %v1611
  %v1847 = vpack.c.b16 %v1614, %v1613
  %v1848 = vpack.c.b16 %v1616, %v1615
  %v1849 = vpack.c.b16 %v1618, %v1617
  %v1850 = vpack.c.b16 %v1620, %v1619
  %v1851 = vpack.c.b16 %v1622, %v1621
  %v1852 = vpack.c.b16 %v1624, %v1623
  %v1853 = vpack.c.b16 %v1626, %v1625
  %v1854 = vpack.c.b16 %v1628, %v1627
  %v1855 = vpack.c.b16 %v1630, %v1629
  %v1856 = vpack.c.b16 %v1632, %v1631
  %v1857 = vpack.c.b16 %v1634, %v1633
  %v1858 = vpack.c.b16 %v1636, %v1635
  %v1859 = vpack.c.b16 %v1638, %v1637
  %v1860 = vpack.c.b16 %v1640, %v1639
  %v1861 = vpack.c.b16 %v1642, %v1641
  %v1862 = vpack.c.b16 %v1644, %v1643
  %v1863 = vpack.c.b16 %v1646, %v1645
  %v1864 = vpack.c.b16 %v1648, %v1647
  %v1865 = vpack.c.b16 %v1650, %v1649
  %v1866 = vpack.c.b16 %v1652, %v1651
  %v1867 = vpack.c.b16 %v1654, %v1653
  %v1868 = vpack.c.b16 %v1656, %v1655
  %v1869 = vpack.c.b16 %v1658, %v1657
  %v1870 = vpack.c.b16 %v1660, %v1659
  %v1871 = vpack.c.b16 %v1662, %v1661
  %v1872 = vpack.c.b16 %v1664, %v1663
  %v1873 = vpack.c.b16 %v1666, %v1665
  %v1874 = vpack.c.b16 %v1668, %v1667
  %v1875 = vpack.c.b16 %v1670, %v1669
  %v1876 = vpack.c.b16 %v1672, %v1671
  %v1877 = vpack.c.b16 %v1674, %v1673
  %v1878 = vpack.c.b16 %v1676, %v1675
  %v1879 = vpack.c.b16 %v1678, %v1677
  %v1880 = vpack.c.b16 %v1680, %v1679
  %v1881 = vpack.c.b16 %v1682, %v1681
  %v1882 = vpack.c.b16 %v1684, %v1683
  %v1883 = vpack.c.b16 %v1686, %v1685
  %v1884 = vpack.c.b16 %v1688, %v1687
  %v1885 = vpack.c.b16 %v1690, %v1689
  %v1886 = vpack.c.b16 %v1692, %v1691
  %v1887 = vpack.c.b16 %v1694, %v1693
  %v1888 = vpack.c.b16 %v1696, %v1695
  %v1889 = vpack.c.b16 %v1698, %v1697
  %v1890 = vpack.c.b16 %v1700, %v1699
  %v1891 = vpack.c.b16 %v1702, %v1701
  %v1892 = vpack.c.b16 %v1704, %v1703
  %v1893 = vpack.c.b16 %v1706, %v1705
  %v1894 = vpack.c.b16 %v1708, %v1707
  %v1895 = vpack.c.b16 %v1710, %v1709
  %v1896 = vpack.c.b16 %v1712, %v1711
  %v1897 = vpack.c.b16 %v1714, %v1713
  %v1898 = vpack.c.b16 %v1716, %v1715
  %v1899 = vpack.c.b16 %v1718, %v1717
  %v1900 = vpack.c.b16 %v1720, %v1719
  %v1901 = vpack.c.b16 %v1722, %v1721
  %v1902 = vpack.c.b16 %v1724, %v1723
  %v1903 = vpack.c.b16 %v1726, %v1725
  %v1904 = vpack.c.b16 %v1728, %v1727
  %v1905 = vpack.c.b16 %v1730, %v1729
  %v1906 = vpack.c.b16 %v1732, %v1731
  %v1907 = vpack.c.b16 %v1734, %v1733
  %v1908 = vpack.c.b16 %v1736, %v1735
  %v1909 = vpack.c.b16 %v1738, %v1737
  %v1910 = vpack.c.b16 %v1740, %v1739
  %v1911 = vpack.c.b16 %v1742, %v1741
  %v1912 = vpack.c.b16 %v1744, %v1743
  %v1913 = vpack.c.b16 %v1746, %v1745
  %v1914 = vpack.c.b16 %v1748, %v1747
  %v1915 = vpack.c.b16 %v1750, %v1749
  %v1916 = vpack.c.b16 %v1752, %v1751
  %v1917 = vpack.c.b16 %v1754, %v1753
  %v1918 = vpack.c.b16 %v1756, %v1755
  %v1919 = vpack.c.b16 %v1758, %v1757
  %v1920 = vpack.c.b16 %v1760, %v1759
  %v1921 = vpack.c.b16 %v1762, %v1761
  %v1922 = vpack.c.b16 %v1764, %v1763
  %v1923 = vpack.c.b16 %v1766, %v1765
  %v1924 = vpack.c.b16 %v1768, %v1767
  %v1925 = vpack.c.b16 %v1770, %v1769
  %v1926 = vpack.c.b16 %v1772, %v1771
  %v1927 = vpack.c.b16 %v1774, %v1773
  %v1928 = vpack.c.b16 %v1776, %v1775
  %v1929 = vpack.c.b16 %v1778, %v1777
  %v1930 = vpack.c.b16 %v1780, %v1779
  %v1931 = vpack.c.b16 %v1782, %v1781
  %v1932 = vpack.c.b16 %v1784, %v1783
  %v1933 = vpack.c.b16 %v1786, %v1785
  %v1934 = vpack.c.b16 %v1788, %v1787
  %v1935 = vpack.c.b16 %v1790, %v1789
  %v1936 = vpack.c.b16 %v1792, %v1791
  %v1937 = vpack.c.b16 %v1794, %v1793
  %v1938 = vpack.c.b16 %v1796, %v1795
  %v1939 = vpack.c.b16 %v1798, %v1797
  %v1940 = vpack.c.b16 %v1800, %v1799
  %v1941 = vpack.c.b16 %v1802, %v1801
  %v1942 = vpack.c.b16 %v1804, %v1803
  %v1943 = vpack.c.b16 %v1806, %v1805
  %v1944 = vpack.c.b16 %v1808, %v1807
  %v1945 = vpack.c.b16 %v1810, %v1809
  %v1946 = vpack.c.b16 %v1812, %v1811
  %v1947 = vpack.c.b16 %v1814, %v1813
  %v1948 = vpack.c.b16 %v1816, %v1815
  %v1949 = vpack.c.b16 %v1818, %v1817
  %v1950 = vpack.c.b16 %v1820, %v1819
  %v1951 = vpack.c.b16 %v1822, %v1821
  %v1952 = vpack.c.b16 %v1824, %v1823
  %2081 = vmatprep.subr.bf16.mxu0 0
  %2082 = vmatpush1.bf16.msra.mxu0 %v1825
  %2083 = vmatprep.subr.bf16.mxu0 0
  %2084 = vmatpush1.bf16.msra.mxu0 %v1826
  %2085 = vmatprep.subr.bf16.mxu0 0
  %2086 = vmatpush1.bf16.msra.mxu0 %v1827
  %2087 = vmatprep.subr.bf16.mxu0 0
  %2088 = vmatpush1.bf16.msra.mxu0 %v1828
  %2089 = vmatprep.subr.bf16.mxu0 0
  %2090 = vmatpush1.bf16.msra.mxu0 %v1829
  %2091 = vmatprep.subr.bf16.mxu0 0
  %2092 = vmatpush1.bf16.msra.mxu0 %v1830
  %2093 = vmatprep.subr.bf16.mxu0 0
  %2094 = vmatpush1.bf16.msra.mxu0 %v1831
  %2095 = vmatprep.subr.bf16.mxu0 0
  %2096 = vmatpush1.bf16.msra.mxu0 %v1832
  %2097 = vmatprep.subr.bf16.mxu0 0
  %2098 = vmatpush1.bf16.msra.mxu0 %v1833
  %2099 = vmatprep.subr.bf16.mxu0 0
  %2100 = vmatpush1.bf16.msra.mxu0 %v1834
  %2101 = vmatprep.subr.bf16.mxu0 0
  %2102 = vmatpush1.bf16.msra.mxu0 %v1835
  %2103 = vmatprep.subr.bf16.mxu0 0
  %2104 = vmatpush1.bf16.msra.mxu0 %v1836
  %2105 = vmatprep.subr.bf16.mxu0 0
  %2106 = vmatpush1.bf16.msra.mxu0 %v1837
  %2107 = vmatprep.subr.bf16.mxu0 0
  %2108 = vmatpush1.bf16.msra.mxu0 %v1838
  %2109 = vmatprep.subr.bf16.mxu0 0
  %2110 = vmatpush1.bf16.msra.mxu0 %v1839
  %2111 = vmatprep.subr.bf16.mxu0 0
  %2112 = vmatpush1.bf16.msra.mxu0 %v1840
  %2113 = vmatprep.mubr.bf16.mxu0 %v964
  %2114 = vmatmul.mubr.bf16.gmra.mrb[0].mxu0 %v963
  %v2115 = vpop.f32.mrb[0].mxu0
  %v2116 = vadd.f32 %v1310, %v2115
  %v2117 = vpop.f32.mrb[0].mxu0
  %v2118 = vpop.f32.mrb[0].mxu0
  %v2119 = vpop.f32.mrb[0].mxu0
  %2120 = vdwg.mxu0
  %2121 = vmatprep.subr.bf16.mxu0 0
  %2122 = vmatpush1.bf16.msra.mxu0 %v1841
  %2123 = vmatprep.subr.bf16.mxu0 0
  %2124 = vmatpush1.bf16.msra.mxu0 %v1842
  %2125 = vmatprep.subr.bf16.mxu0 0
  %2126 = vmatpush1.bf16.msra.mxu0 %v1843
  %2127 = vmatprep.subr.bf16.mxu0 0
  %2128 = vmatpush1.bf16.msra.mxu0 %v1844
  %2129 = vmatprep.subr.bf16.mxu0 0
  %2130 = vmatpush1.bf16.msra.mxu0 %v1845
  %2131 = vmatprep.subr.bf16.mxu0 0
  %2132 = vmatpush1.bf16.msra.mxu0 %v1846
  %2133 = vmatprep.subr.bf16.mxu0 0
  %2134 = vmatpush1.bf16.msra.mxu0 %v1847
  %2135 = vmatprep.subr.bf16.mxu0 0
  %2136 = vmatpush1.bf16.msra.mxu0 %v1848
  %2137 = vmatprep.subr.bf16.mxu0 0
  %2138 = vmatpush1.bf16.msra.mxu0 %v1849
  %2139 = vmatprep.subr.bf16.mxu0 0
  %2140 = vmatpush1.bf16.msra.mxu0 %v1850
  %2141 = vmatprep.subr.bf16.mxu0 0
  %2142 = vmatpush1.bf16.msra.mxu0 %v1851
  %2143 = vmatprep.subr.bf16.mxu0 0
  %2144 = vmatpush1.bf16.msra.mxu0 %v1852
  %2145 = vmatprep.subr.bf16.mxu0 0
  %2146 = vmatpush1.bf16.msra.mxu0 %v1853
  %2147 = vmatprep.subr.bf16.mxu0 0
  %2148 = vmatpush1.bf16.msra.mxu0 %v1854
  %2149 = vmatprep.subr.bf16.mxu0 0
  %2150 = vmatpush1.bf16.msra.mxu0 %v1855
  %2151 = vmatprep.subr.bf16.mxu0 0
  %2152 = vmatpush1.bf16.msra.mxu0 %v1856
  %2153 = vmatprep.mubr.bf16.mxu0 %v966
  %2154 = vmatmul.mubr.bf16.gmra.mrb[0].mxu0 %v965
  %v2155 = vpop.f32.mrb[0].mxu0
  %v2156 = vadd.f32 %v2116, %v2155
  %v2157 = vpop.f32.mrb[0].mxu0
  %v2158 = vpop.f32.mrb[0].mxu0
  %v2159 = vpop.f32.mrb[0].mxu0
  %2160 = vdwg.mxu0
  %2161 = vmatprep.subr.bf16.mxu0 0
  %2162 = vmatpush1.bf16.msra.mxu0 %v1857
  %2163 = vmatprep.subr.bf16.mxu0 0
  %2164 = vmatpush1.bf16.msra.mxu0 %v1858
  %2165 = vmatprep.subr.bf16.mxu0 0
  %2166 = vmatpush1.bf16.msra.mxu0 %v1859
  %2167 = vmatprep.subr.bf16.mxu0 0
  %2168 = vmatpush1.bf16.msra.mxu0 %v1860
  %2169 = vmatprep.subr.bf16.mxu0 0
  %2170 = vmatpush1.bf16.msra.mxu0 %v1861
  %2171 = vmatprep.subr.bf16.mxu0 0
  %2172 = vmatpush1.bf16.msra.mxu0 %v1862
  %2173 = vmatprep.subr.bf16.mxu0 0
  %2174 = vmatpush1.bf16.msra.mxu0 %v1863
  %2175 = vmatprep.subr.bf16.mxu0 0
  %2176 = vmatpush1.bf16.msra.mxu0 %v1864
  %2177 = vmatprep.subr.bf16.mxu0 0
  %2178 = vmatpush1.bf16.msra.mxu0 %v1865
  %2179 = vmatprep.subr.bf16.mxu0 0
  %2180 = vmatpush1.bf16.msra.mxu0 %v1866
  %2181 = vmatprep.subr.bf16.mxu0 0
  %2182 = vmatpush1.bf16.msra.mxu0 %v1867
  %2183 = vmatprep.subr.bf16.mxu0 0
  %2184 = vmatpush1.bf16.msra.mxu0 %v1868
  %2185 = vmatprep.subr.bf16.mxu0 0
  %2186 = vmatpush1.bf16.msra.mxu0 %v1869
  %2187 = vmatprep.subr.bf16.mxu0 0
  %2188 = vmatpush1.bf16.msra.mxu0 %v1870
  %2189 = vmatprep.subr.bf16.mxu0 0
  %2190 = vmatpush1.bf16.msra.mxu0 %v1871
  %2191 = vmatprep.subr.bf16.mxu0 0
  %2192 = vmatpush1.bf16.msra.mxu0 %v1872
  %2193 = vmatprep.mubr.bf16.mxu0 %v968
  %2194 = vmatmul.mubr.bf16.gmra.mrb[0].mxu0 %v967
  %v2195 = vpop.f32.mrb[0].mxu0
  %v2196 = vadd.f32 %v2156, %v2195
  %v2197 = vpop.f32.mrb[0].mxu0
  %v2198 = vpop.f32.mrb[0].mxu0
  %v2199 = vpop.f32.mrb[0].mxu0
  %2200 = vdwg.mxu0
  %2201 = vmatprep.subr.bf16.mxu0 0
  %2202 = vmatpush1.bf16.msra.mxu0 %v1873
  %2203 = vmatprep.subr.bf16.mxu0 0
  %2204 = vmatpush1.bf16.msra.mxu0 %v1874
  %2205 = vmatprep.subr.bf16.mxu0 0
  %2206 = vmatpush1.bf16.msra.mxu0 %v1875
  %2207 = vmatprep.subr.bf16.mxu0 0
  %2208 = vmatpush1.bf16.msra.mxu0 %v1876
  %2209 = vmatprep.subr.bf16.mxu0 0
  %2210 = vmatpush1.bf16.msra.mxu0 %v1877
  %2211 = vmatprep.subr.bf16.mxu0 0
  %2212 = vmatpush1.bf16.msra.mxu0 %v1878
  %2213 = vmatprep.subr.bf16.mxu0 0
  %2214 = vmatpush1.bf16.msra.mxu0 %v1879
  %2215 = vmatprep.subr.bf16.mxu0 0
  %2216 = vmatpush1.bf16.msra.mxu0 %v1880
  %2217 = vmatprep.subr.bf16.mxu0 0
  %2218 = vmatpush1.bf16.msra.mxu0 %v1881
  %2219 = vmatprep.subr.bf16.mxu0 0
  %2220 = vmatpush1.bf16.msra.mxu0 %v1882
  %2221 = vmatprep.subr.bf16.mxu0 0
  %2222 = vmatpush1.bf16.msra.mxu0 %v1883
  %2223 = vmatprep.subr.bf16.mxu0 0
  %2224 = vmatpush1.bf16.msra.mxu0 %v1884
  %2225 = vmatprep.subr.bf16.mxu0 0
  %2226 = vmatpush1.bf16.msra.mxu0 %v1885
  %2227 = vmatprep.subr.bf16.mxu0 0
  %2228 = vmatpush1.bf16.msra.mxu0 %v1886
  %2229 = vmatprep.subr.bf16.mxu0 0
  %2230 = vmatpush1.bf16.msra.mxu0 %v1887
  %2231 = vmatprep.subr.bf16.mxu0 0
  %2232 = vmatpush1.bf16.msra.mxu0 %v1888
  %2233 = vmatprep.mubr.bf16.mxu0 %v970
  %2234 = vmatmul.mubr.bf16.gmra.mrb[0].mxu0 %v969
  %v2235 = vpop.f32.mrb[0].mxu0
  %v2236 = vadd.f32 %v2196, %v2235
  %v2237 = vpop.f32.mrb[0].mxu0
  %v2238 = vpop.f32.mrb[0].mxu0
  %v2239 = vpop.f32.mrb[0].mxu0
  %2240 = vdwg.mxu0
  %2241 = vmatprep.subr.bf16.mxu0 0
  %2242 = vmatpush1.bf16.msra.mxu0 %v1889
  %2243 = vmatprep.subr.bf16.mxu0 0
  %2244 = vmatpush1.bf16.msra.mxu0 %v1890
  %2245 = vmatprep.subr.bf16.mxu0 0
  %2246 = vmatpush1.bf16.msra.mxu0 %v1891
  %2247 = vmatprep.subr.bf16.mxu0 0
  %2248 = vmatpush1.bf16.msra.mxu0 %v1892
  %2249 = vmatprep.subr.bf16.mxu0 0
  %2250 = vmatpush1.bf16.msra.mxu0 %v1893
  %2251 = vmatprep.subr.bf16.mxu0 0
  %2252 = vmatpush1.bf16.msra.mxu0 %v1894
  %2253 = vmatprep.subr.bf16.mxu0 0
  %2254 = vmatpush1.bf16.msra.mxu0 %v1895
  %2255 = vmatprep.subr.bf16.mxu0 0
  %2256 = vmatpush1.bf16.msra.mxu0 %v1896
  %2257 = vmatprep.subr.bf16.mxu0 0
  %2258 = vmatpush1.bf16.msra.mxu0 %v1897
  %2259 = vmatprep.subr.bf16.mxu0 0
  %2260 = vmatpush1.bf16.msra.mxu0 %v1898
  %2261 = vmatprep.subr.bf16.mxu0 0
  %2262 = vmatpush1.bf16.msra.mxu0 %v1899
  %2263 = vmatprep.subr.bf16.mxu0 0
  %2264 = vmatpush1.bf16.msra.mxu0 %v1900
  %2265 = vmatprep.subr.bf16.mxu0 0
  %2266 = vmatpush1.bf16.msra.mxu0 %v1901
  %2267 = vmatprep.subr.bf16.mxu0 0
  %2268 = vmatpush1.bf16.msra.mxu0 %v1902
  %2269 = vmatprep.subr.bf16.mxu0 0
  %2270 = vmatpush1.bf16.msra.mxu0 %v1903
  %2271 = vmatprep.subr.bf16.mxu0 0
  %2272 = vmatpush1.bf16.msra.mxu0 %v1904
  %2273 = vmatprep.mubr.bf16.mxu0 %v972
  %2274 = vmatmul.mubr.bf16.gmra.mrb[0].mxu0 %v971
  %v2275 = vpop.f32.mrb[0].mxu0
  %v2276 = vadd.f32 %v2236, %v2275
  %v2277 = vpop.f32.mrb[0].mxu0
  %v2278 = vpop.f32.mrb[0].mxu0
  %v2279 = vpop.f32.mrb[0].mxu0
  %2280 = vdwg.mxu0
  %2281 = vmatprep.subr.bf16.mxu0 0
  %2282 = vmatpush1.bf16.msra.mxu0 %v1905
  %2283 = vmatprep.subr.bf16.mxu0 0
  %2284 = vmatpush1.bf16.msra.mxu0 %v1906
  %2285 = vmatprep.subr.bf16.mxu0 0
  %2286 = vmatpush1.bf16.msra.mxu0 %v1907
  %2287 = vmatprep.subr.bf16.mxu0 0
  %2288 = vmatpush1.bf16.msra.mxu0 %v1908
  %2289 = vmatprep.subr.bf16.mxu0 0
  %2290 = vmatpush1.bf16.msra.mxu0 %v1909
  %2291 = vmatprep.subr.bf16.mxu0 0
  %2292 = vmatpush1.bf16.msra.mxu0 %v1910
  %2293 = vmatprep.subr.bf16.mxu0 0
  %2294 = vmatpush1.bf16.msra.mxu0 %v1911
  %2295 = vmatprep.subr.bf16.mxu0 0
  %2296 = vmatpush1.bf16.msra.mxu0 %v1912
  %2297 = vmatprep.subr.bf16.mxu0 0
  %2298 = vmatpush1.bf16.msra.mxu0 %v1913
  %2299 = vmatprep.subr.bf16.mxu0 0
  %2300 = vmatpush1.bf16.msra.mxu0 %v1914
  %2301 = vmatprep.subr.bf16.mxu0 0
  %2302 = vmatpush1.bf16.msra.mxu0 %v1915
  %2303 = vmatprep.subr.bf16.mxu0 0
  %2304 = vmatpush1.bf16.msra.mxu0 %v1916
  %2305 = vmatprep.subr.bf16.mxu0 0
  %2306 = vmatpush1.bf16.msra.mxu0 %v1917
  %2307 = vmatprep.subr.bf16.mxu0 0
  %2308 = vmatpush1.bf16.msra.mxu0 %v1918
  %2309 = vmatprep.subr.bf16.mxu0 0
  %2310 = vmatpush1.bf16.msra.mxu0 %v1919
  %2311 = vmatprep.subr.bf16.mxu0 0
  %2312 = vmatpush1.bf16.msra.mxu0 %v1920
  %2313 = vmatprep.mubr.bf16.mxu0 %v974
  %2314 = vmatmul.mubr.bf16.gmra.mrb[0].mxu0 %v973
  %v2315 = vpop.f32.mrb[0].mxu0
  %v2316 = vadd.f32 %v2276, %v2315
  %v2317 = vpop.f32.mrb[0].mxu0
  %v2318 = vpop.f32.mrb[0].mxu0
  %v2319 = vpop.f32.mrb[0].mxu0
  %2320 = vdwg.mxu0
  %2321 = vmatprep.subr.bf16.mxu0 0
  %2322 = vmatpush1.bf16.msra.mxu0 %v1921
  %2323 = vmatprep.subr.bf16.mxu0 0
  %2324 = vmatpush1.bf16.msra.mxu0 %v1922
  %2325 = vmatprep.subr.bf16.mxu0 0
  %2326 = vmatpush1.bf16.msra.mxu0 %v1923
  %2327 = vmatprep.subr.bf16.mxu0 0
  %2328 = vmatpush1.bf16.msra.mxu0 %v1924
  %2329 = vmatprep.subr.bf16.mxu0 0
  %2330 = vmatpush1.bf16.msra.mxu0 %v1925
  %2331 = vmatprep.subr.bf16.mxu0 0
  %2332 = vmatpush1.bf16.msra.mxu0 %v1926
  %2333 = vmatprep.subr.bf16.mxu0 0
  %2334 = vmatpush1.bf16.msra.mxu0 %v1927
  %2335 = vmatprep.subr.bf16.mxu0 0
  %2336 = vmatpush1.bf16.msra.mxu0 %v1928
  %2337 = vmatprep.subr.bf16.mxu0 0
  %2338 = vmatpush1.bf16.msra.mxu0 %v1929
  %2339 = vmatprep.subr.bf16.mxu0 0
  %2340 = vmatpush1.bf16.msra.mxu0 %v1930
  %2341 = vmatprep.subr.bf16.mxu0 0
  %2342 = vmatpush1.bf16.msra.mxu0 %v1931
  %2343 = vmatprep.subr.bf16.mxu0 0
  %2344 = vmatpush1.bf16.msra.mxu0 %v1932
  %2345 = vmatprep.subr.bf16.mxu0 0
  %2346 = vmatpush1.bf16.msra.mxu0 %v1933
  %2347 = vmatprep.subr.bf16.mxu0 0
  %2348 = vmatpush1.bf16.msra.mxu0 %v1934
  %2349 = vmatprep.subr.bf16.mxu0 0
  %2350 = vmatpush1.bf16.msra.mxu0 %v1935
  %2351 = vmatprep.subr.bf16.mxu0 0
  %2352 = vmatpush1.bf16.msra.mxu0 %v1936
  %2353 = vmatprep.mubr.bf16.mxu0 %v976
  %2354 = vmatmul.mubr.bf16.gmra.mrb[0].mxu0 %v975
  %v2355 = vpop.f32.mrb[0].mxu0
  %v2356 = vadd.f32 %v2316, %v2355
  %v2357 = vpop.f32.mrb[0].mxu0
  %v2358 = vpop.f32.mrb[0].mxu0
  %v2359 = vpop.f32.mrb[0].mxu0
  %2360 = vdwg.mxu0
  %2361 = vmatprep.subr.bf16.mxu0 0
  %2362 = vmatpush1.bf16.msra.mxu0 %v1937
  %2363 = vmatprep.subr.bf16.mxu0 0
  %2364 = vmatpush1.bf16.msra.mxu0 %v1938
  %2365 = vmatprep.subr.bf16.mxu0 0
  %2366 = vmatpush1.bf16.msra.mxu0 %v1939
  %2367 = vmatprep.subr.bf16.mxu0 0
  %2368 = vmatpush1.bf16.msra.mxu0 %v1940
  %2369 = vmatprep.subr.bf16.mxu0 0
  %2370 = vmatpush1.bf16.msra.mxu0 %v1941
  %2371 = vmatprep.subr.bf16.mxu0 0
  %2372 = vmatpush1.bf16.msra.mxu0 %v1942
  %2373 = vmatprep.subr.bf16.mxu0 0
  %2374 = vmatpush1.bf16.msra.mxu0 %v1943
  %2375 = vmatprep.subr.bf16.mxu0 0
  %2376 = vmatpush1.bf16.msra.mxu0 %v1944
  %2377 = vmatprep.subr.bf16.mxu0 0
  %2378 = vmatpush1.bf16.msra.mxu0 %v1945
  %2379 = vmatprep.subr.bf16.mxu0 0
  %2380 = vmatpush1.bf16.msra.mxu0 %v1946
  %2381 = vmatprep.subr.bf16.mxu0 0
  %2382 = vmatpush1.bf16.msra.mxu0 %v1947
  %2383 = vmatprep.subr.bf16.mxu0 0
  %2384 = vmatpush1.bf16.msra.mxu0 %v1948
  %2385 = vmatprep.subr.bf16.mxu0 0
  %2386 = vmatpush1.bf16.msra.mxu0 %v1949
  %2387 = vmatprep.subr.bf16.mxu0 0
  %2388 = vmatpush1.bf16.msra.mxu0 %v1950
  %2389 = vmatprep.subr.bf16.mxu0 0
  %2390 = vmatpush1.bf16.msra.mxu0 %v1951
  %2391 = vmatprep.subr.bf16.mxu0 0
  %2392 = vmatpush1.bf16.msra.mxu0 %v1952
  %2393 = vmatprep.mubr.bf16.mxu0 %v978
  %2394 = vmatmul.mubr.bf16.gmra.mrb[0].mxu0 %v977
  %v2395 = vpop.f32.mrb[0].mxu0
  %v2396 = vadd.f32 %v2356, %v2395
  %v2397 = vpop.f32.mrb[0].mxu0
  %v2398 = vpop.f32.mrb[0].mxu0
  %v2399 = vpop.f32.mrb[0].mxu0
  %2400 = vdwg.mxu0
  %v2401 = vld [vmem:[%s9] sm:$0x1]
  %v2403 = vlaneseq
  %v2404 = vshrl.u32 %v2403, 7
  %v2405 = vsub.s32 0, %v2404
  %v2406 = vrot.slane %v2401, %v2405
  %v2408 = vadd.f32 %v2396, %v2406
  %v2409 = vmax.f32 %v2408, 0.0
  %v2410 = vld [vmem:[%s10] sm:$0x1]
  %v2412 = vlaneseq
  %v2413 = vshrl.u32 %v2412, 7
  %v2414 = vsub.s32 0, %v2413
  %v2415 = vrot.slane %v2410, %v2414
  %v2417 = vmul.f32 %v2409, %v2415
  %vm2418 = vcmask 517120
  %v2419 = vsel %vm2418, %v2417, 0.0
  %2420 = vadd.xlane.f32.xlu0 %v2419
  %v2421 = vpop.xlane.xlu0 %2420
  %v2422 = vld [vmem:[#allocation4] sm:$0x1]
  %v2424 = vlaneseq
  %v2425 = vshrl.u32 %v2424, 7
  %v2426 = vsub.s32 0, %v2425
  %v2427 = vrot.slane %v2422, %v2426
  %v2429 = vadd.f32 %v2421, %v2427
  %vm2430 = vcmask 1024
  %2431 = vst.msk [vmem:[%s12] sm:$0x3] %vm2430, %v2429
  // Predicated region
  $region50: #{kian_net_forward.1} parent=0 // pred_check
    _
  $region51: #{kian_net_forward.1} parent=0 // pred_check_branch
    %2433 = sbr.rel (0) target = $region53
  $region52: #{kian_net_forward.1} parent=0 // pred_region
    _
  $region53: #{kian_net_forward.1} parent=0 // pred_fallthru
    _
  // Predicated region
  $region54: #{kian_net_forward.1} parent=0 // pred_check
    _
  $region55: #{kian_net_forward.1} parent=0 // pred_check_branch
    %2435 = sbr.rel (0) target = $region57
  $region56: #{kian_net_forward.1} parent=0 // pred_region
    _
  $region57: #{kian_net_forward.1} parent=0 // pred_fallthru
    _

</llo_original>
